<compile_context>
chip_gen: v7x
topology: tpu7x:2x2x1
jax: 0.10.0
libtpu: 0.0.40
codegen_flags: <defaults>
</compile_context>

<pallas_src>
import functools

import jax
import jax.numpy as jnp
from jax.experimental import pallas as pl
from jax.experimental.pallas import tpu as pltpu


def nrbs_kernel(n, N, mu, x_ref, wenc_ref, benc_ref, blf_ref, dg_ref, out_ref):
    # ---- encode: e = x @ W_enc.T + b_enc  -> [TB, n] ----
    x = x_ref[...]                                                     # [TB, N]
    e = jnp.dot(x, wenc_ref[...], preferred_element_type=jnp.float32)  # [TB, n]
    e = e + benc_ref[...]                                              # [1, n] sublane-broadcast

    # ---- fused bandwidths: one MXU call for all n basis functions ----
    # blf_ref is bandwidth_layers transposed/reshaped to [n(j), n(i)*N]
    bw_all = jax.nn.sigmoid(
        jnp.dot(e, blf_ref[...], preferred_element_type=jnp.float32))  # [TB, n*N]

    acc = jnp.zeros(out_ref.shape, jnp.float32)                        # [TB, N]

    # static loop over latent basis functions (n is small)
    for i in range(n):
        # 128-aligned lane slice of the fused bandwidth output.
        bwi = bw_all[:, i * N:(i + 1) * N] * float(mu)                 # [TB, N]
        d2 = bwi * bwi                                                 # (bw*mu)^2

        # Rescaled window weights: w_m = max(d2 - m^2, 0). The common positive
        # factor 1/d2 of the original relu(1 - m^2/d2) cancels in num/wsum.
        # m = 0 term: weight is exactly d2 (> 0), no clamp needed.
        wsum = d2
        num = dg_ref[i, 0] * d2                                        # [1,N] * [TB,N]
        for m in range(1, mu):
            w_m = jnp.maximum(d2 - float(m * m), 0.0)                  # [TB, N]
            wsum = wsum + w_m
            num = num + dg_ref[i, m] * w_m

        acc = acc + e[:, i:i + 1] * (num / wsum)                       # lane-broadcast of e[:, i]

    out_ref[...] = acc


def nrbs_forward(x, Wenc, benc, BL, decoder, neighbours, mu):
    """EncoderDecoder.forward. x:[B,N] -> out:[B,N]."""
    B, N = x.shape
    n = Wenc.shape[0]

    # Glue (plain JAX): data-dependent gather of the decoder rows by neighbour index.
    # TODO(synk): data-dependent lane gather has no clean rectangular-BlockSpec
    # equivalent; done host-side (precompute once when decoder/neighbours are static).
    Dg = decoder[:, neighbours]                       # [n, N, mu]
    Dg = jnp.transpose(Dg, (0, 2, 1))[:, :, None, :]  # [n, mu, 1, N]  (N last -> lanes)

    # Fuse the n bandwidth matmuls: BLf[j, i*N + k] = BL[i, j, k]  -> [n, n*N]
    BLf = jnp.transpose(BL, (1, 0, 2)).reshape(n, n * N)

    WencT = Wenc.T                                    # [N, n]
    benc2 = benc[None, :]                             # [1, n]

    # Batch tile: <= 64 rows keeps the [TB, N] working set inside the vreg file.
    TB = min(B, 64)
    grid = (pl.cdiv(B, TB),)

    kernel = functools.partial(nrbs_kernel, n, N, mu)
    return pl.pallas_call(
        kernel,
        out_shape=jax.ShapeDtypeStruct((B, N), jnp.float32),
        grid=grid,
        in_specs=[
            pl.BlockSpec((TB, N), lambda b: (b, 0)),              # x: batch-tiled
            pl.BlockSpec((N, n), lambda b: (0, 0)),               # W_enc.T (resident)
            pl.BlockSpec((1, n), lambda b: (0, 0)),               # b_enc   (resident)
            pl.BlockSpec((n, n * N), lambda b: (0, 0)),           # fused bandwidth weights
            pl.BlockSpec((n, mu, 1, N), lambda b: (0, 0, 0, 0)),  # gathered decoder
        ],
        out_specs=pl.BlockSpec((TB, N), lambda b: (b, 0)),
        compiler_params=pltpu.CompilerParams(
            dimension_semantics=("parallel",)),
    )(x, WencT, benc2, BLf, Dg)


def nrbs_reference(x, Wenc, benc, BL, decoder, neighbours, mu):
    """Pure-JAX reference mirroring the PyTorch forward."""
    e = x @ Wenc.T + benc                                               # [B, n]
    bw = jax.nn.sigmoid(jnp.einsum('bj,ijk->bik', e, BL))               # [B, n, N]
    m = jnp.arange(mu, dtype=jnp.float32)
    win = jnp.maximum(1.0 - m ** 2 / (bw[..., None] * mu) ** 2, 0.0)    # [B, n, N, mu]
    win = win / win.sum(-1, keepdims=True)
    Dg = decoder[:, neighbours]                                         # [n, N, mu]
    sb = jnp.einsum('ikm,bikm->bik', Dg, win)                           # [B, n, N]
    return jnp.einsum('bi,bik->bk', e, sb)                              # [B, N]


if __name__ == "__main__":
    B, N, n, mu = 2, 128, 8, 8

    key = jax.random.PRNGKey(0)
    kx, kw, kb, kd, kbl, knb = jax.random.split(key, 6)

    bound = 1.0 / (N ** 0.5)
    x = jax.random.normal(kx, (B, N), jnp.float32)
    Wenc = jax.random.uniform(kw, (n, N), jnp.float32, -bound, bound)   # encoder weight
    benc = jax.random.uniform(kb, (n,), jnp.float32, -bound, bound)     # encoder bias
    decoder = jax.random.uniform(kd, (n, N), jnp.float32, -0.01, 0.01)  # decoder param
    BL = jax.random.uniform(kbl, (n, n, N), jnp.float32, -0.01, 0.01)   # bandwidth_layers
    neighbours = jax.random.randint(knb, (N, mu), 0, N, jnp.int32)      # neighbour index table

    out = jax.block_until_ready(nrbs_forward(x, Wenc, benc, BL, decoder, neighbours, mu))
    ref = nrbs_reference(x, Wenc, benc, BL, decoder, neighbours, mu)

    assert out.shape == (B, N), out.shape
    assert jnp.allclose(out, ref, atol=1e-5, rtol=1e-5), float(jnp.max(jnp.abs(out - ref)))
    print("KERNEL_OK")
</pallas_src>

<mosaic_0001>
module attributes {stable_mosaic.version = 11 : i64} {
  func.func @nrbs_kernel(%arg0: i32, %arg1: memref<2x128xf32, #tpu.memory_space<vmem>>, %arg2: memref<128x8xf32, #tpu.memory_space<vmem>>, %arg3: memref<1x8xf32, #tpu.memory_space<vmem>>, %arg4: memref<8x1024xf32, #tpu.memory_space<vmem>>, %arg5: memref<8x8x1x128xf32, #tpu.memory_space<vmem>>, %arg6: memref<2x128xf32, #tpu.memory_space<vmem>>) attributes {dimension_semantics = [#tpu.dimension_semantics<parallel>], iteration_bounds = array<i64: 1>, scalar_prefetch = 0 : i64, scratch_operands = 0 : i64, tpu.core_type = #tpu.core_type<tc>, window_params = [{transform_indices = @transform_0, window_bounds = array<i64: 2, 128>}, {pipeline_mode = #tpu.pipeline_mode<synchronous>, transform_indices = @transform_1, window_bounds = array<i64: 128, 8>}, {pipeline_mode = #tpu.pipeline_mode<synchronous>, transform_indices = @transform_2, window_bounds = array<i64: 1, 8>}, {pipeline_mode = #tpu.pipeline_mode<synchronous>, transform_indices = @transform_3, window_bounds = array<i64: 8, 1024>}, {pipeline_mode = #tpu.pipeline_mode<synchronous>, transform_indices = @transform_4, window_bounds = array<i64: 8, 8, 1, 128>}, {transform_indices = @transform_5, window_bounds = array<i64: 2, 128>}]} {
    %c0 = arith.constant 0 : index
    %c0_0 = arith.constant 0 : index
    %0 = vector.load %arg1[%c0, %c0_0] : memref<2x128xf32, #tpu.memory_space<vmem>>, vector<2x128xf32>
    %c0_1 = arith.constant 0 : index
    %c0_2 = arith.constant 0 : index
    %1 = vector.load %arg2[%c0_1, %c0_2] : memref<128x8xf32, #tpu.memory_space<vmem>>, vector<128x8xf32>
    %cst = arith.constant dense<0.000000e+00> : vector<2x8xf32>
    %2 = tpu.matmul %0, %1, %cst {dimension_numbers = #tpu.dot_dimension_numbers<[1], [0], [0], [1], [0, 0, 1, 1], [], []>} : vector<2x128xf32>, vector<128x8xf32>, vector<2x8xf32> -> vector<2x8xf32>
    %c0_3 = arith.constant 0 : index
    %c0_4 = arith.constant 0 : index
    %3 = vector.load %arg3[%c0_3, %c0_4] : memref<1x8xf32, #tpu.memory_space<vmem>>, vector<1x8xf32>
    %4 = vector.broadcast %3 : vector<1x8xf32> to vector<2x8xf32>
    %5 = arith.addf %2, %4 : vector<2x8xf32>
    %c0_5 = arith.constant 0 : index
    %c0_6 = arith.constant 0 : index
    %6 = vector.load %arg4[%c0_5, %c0_6] : memref<8x1024xf32, #tpu.memory_space<vmem>>, vector<8x1024xf32>
    %cst_7 = arith.constant dense<0.000000e+00> : vector<2x1024xf32>
    %7 = tpu.matmul %5, %6, %cst_7 {dimension_numbers = #tpu.dot_dimension_numbers<[1], [0], [0], [1], [0, 0, 1, 1], [], []>} : vector<2x8xf32>, vector<8x1024xf32>, vector<2x1024xf32> -> vector<2x1024xf32>
    %8 = arith.negf %7 : vector<2x1024xf32>
    %9 = math.exp %8 : vector<2x1024xf32>
    %cst_8 = arith.constant 1.000000e+00 : f32
    %10 = vector.broadcast %cst_8 : f32 to vector<2x1024xf32>
    %11 = arith.addf %10, %9 : vector<2x1024xf32>
    %12 = arith.divf %10, %11 : vector<2x1024xf32>
    %cst_9 = arith.constant 0.000000e+00 : f32
    %13 = vector.broadcast %cst_9 : f32 to vector<2x128xf32>
    %14 = vector.extract_strided_slice %12 {offsets = [0, 0], sizes = [2, 128], strides = [1, 1]} : vector<2x1024xf32> to vector<2x128xf32>
    %cst_10 = arith.constant 8.000000e+00 : f32
    %15 = vector.broadcast %cst_10 : f32 to vector<2x128xf32>
    %16 = arith.mulf %14, %15 : vector<2x128xf32>
    %17 = arith.mulf %16, %16 : vector<2x128xf32>
    %c0_11 = arith.constant 0 : index
    %c0_12 = arith.constant 0 : index
    %c0_13 = arith.constant 0 : index
    %c0_14 = arith.constant 0 : index
    %18 = vector.load %arg5[%c0_11, %c0_12, %c0_13, %c0_14] : memref<8x8x1x128xf32, #tpu.memory_space<vmem>>, vector<1x1x1x128xf32>
    %19 = vector.shape_cast %18 : vector<1x1x1x128xf32> to vector<1x128xf32>
    %20 = vector.broadcast %19 : vector<1x128xf32> to vector<2x128xf32>
    %21 = arith.mulf %20, %17 : vector<2x128xf32>
    %cst_15 = arith.constant 1.000000e+00 : f32
    %22 = vector.broadcast %cst_15 : f32 to vector<2x128xf32>
    %23 = arith.subf %17, %22 : vector<2x128xf32>
    %cst_16 = arith.constant 0.000000e+00 : f32
    %24 = vector.broadcast %cst_16 : f32 to vector<2x128xf32>
    %25 = arith.maximumf %23, %24 : vector<2x128xf32>
    %26 = arith.addf %17, %25 : vector<2x128xf32>
    %c0_17 = arith.constant 0 : index
    %c1 = arith.constant 1 : index
    %c0_18 = arith.constant 0 : index
    %c0_19 = arith.constant 0 : index
    %27 = vector.load %arg5[%c0_17, %c1, %c0_18, %c0_19] : memref<8x8x1x128xf32, #tpu.memory_space<vmem>>, vector<1x1x1x128xf32>
    %28 = vector.shape_cast %27 : vector<1x1x1x128xf32> to vector<1x128xf32>
    %29 = vector.broadcast %28 : vector<1x128xf32> to vector<2x128xf32>
    %30 = arith.mulf %29, %25 : vector<2x128xf32>
    %31 = arith.addf %21, %30 : vector<2x128xf32>
    %cst_20 = arith.constant 4.000000e+00 : f32
    %32 = vector.broadcast %cst_20 : f32 to vector<2x128xf32>
    %33 = arith.subf %17, %32 : vector<2x128xf32>
    %cst_21 = arith.constant 0.000000e+00 : f32
    %34 = vector.broadcast %cst_21 : f32 to vector<2x128xf32>
    %35 = arith.maximumf %33, %34 : vector<2x128xf32>
    %36 = arith.addf %26, %35 : vector<2x128xf32>
    %c0_22 = arith.constant 0 : index
    %c2 = arith.constant 2 : index
    %c0_23 = arith.constant 0 : index
    %c0_24 = arith.constant 0 : index
    %37 = vector.load %arg5[%c0_22, %c2, %c0_23, %c0_24] : memref<8x8x1x128xf32, #tpu.memory_space<vmem>>, vector<1x1x1x128xf32>
    %38 = vector.shape_cast %37 : vector<1x1x1x128xf32> to vector<1x128xf32>
    %39 = vector.broadcast %38 : vector<1x128xf32> to vector<2x128xf32>
    %40 = arith.mulf %39, %35 : vector<2x128xf32>
    %41 = arith.addf %31, %40 : vector<2x128xf32>
    %cst_25 = arith.constant 9.000000e+00 : f32
    %42 = vector.broadcast %cst_25 : f32 to vector<2x128xf32>
    %43 = arith.subf %17, %42 : vector<2x128xf32>
    %cst_26 = arith.constant 0.000000e+00 : f32
    %44 = vector.broadcast %cst_26 : f32 to vector<2x128xf32>
    %45 = arith.maximumf %43, %44 : vector<2x128xf32>
    %46 = arith.addf %36, %45 : vector<2x128xf32>
    %c0_27 = arith.constant 0 : index
    %c3 = arith.constant 3 : index
    %c0_28 = arith.constant 0 : index
    %c0_29 = arith.constant 0 : index
    %47 = vector.load %arg5[%c0_27, %c3, %c0_28, %c0_29] : memref<8x8x1x128xf32, #tpu.memory_space<vmem>>, vector<1x1x1x128xf32>
    %48 = vector.shape_cast %47 : vector<1x1x1x128xf32> to vector<1x128xf32>
    %49 = vector.broadcast %48 : vector<1x128xf32> to vector<2x128xf32>
    %50 = arith.mulf %49, %45 : vector<2x128xf32>
    %51 = arith.addf %41, %50 : vector<2x128xf32>
    %cst_30 = arith.constant 1.600000e+01 : f32
    %52 = vector.broadcast %cst_30 : f32 to vector<2x128xf32>
    %53 = arith.subf %17, %52 : vector<2x128xf32>
    %cst_31 = arith.constant 0.000000e+00 : f32
    %54 = vector.broadcast %cst_31 : f32 to vector<2x128xf32>
    %55 = arith.maximumf %53, %54 : vector<2x128xf32>
    %56 = arith.addf %46, %55 : vector<2x128xf32>
    %c0_32 = arith.constant 0 : index
    %c4 = arith.constant 4 : index
    %c0_33 = arith.constant 0 : index
    %c0_34 = arith.constant 0 : index
    %57 = vector.load %arg5[%c0_32, %c4, %c0_33, %c0_34] : memref<8x8x1x128xf32, #tpu.memory_space<vmem>>, vector<1x1x1x128xf32>
    %58 = vector.shape_cast %57 : vector<1x1x1x128xf32> to vector<1x128xf32>
    %59 = vector.broadcast %58 : vector<1x128xf32> to vector<2x128xf32>
    %60 = arith.mulf %59, %55 : vector<2x128xf32>
    %61 = arith.addf %51, %60 : vector<2x128xf32>
    %cst_35 = arith.constant 2.500000e+01 : f32
    %62 = vector.broadcast %cst_35 : f32 to vector<2x128xf32>
    %63 = arith.subf %17, %62 : vector<2x128xf32>
    %cst_36 = arith.constant 0.000000e+00 : f32
    %64 = vector.broadcast %cst_36 : f32 to vector<2x128xf32>
    %65 = arith.maximumf %63, %64 : vector<2x128xf32>
    %66 = arith.addf %56, %65 : vector<2x128xf32>
    %c0_37 = arith.constant 0 : index
    %c5 = arith.constant 5 : index
    %c0_38 = arith.constant 0 : index
    %c0_39 = arith.constant 0 : index
    %67 = vector.load %arg5[%c0_37, %c5, %c0_38, %c0_39] : memref<8x8x1x128xf32, #tpu.memory_space<vmem>>, vector<1x1x1x128xf32>
    %68 = vector.shape_cast %67 : vector<1x1x1x128xf32> to vector<1x128xf32>
    %69 = vector.broadcast %68 : vector<1x128xf32> to vector<2x128xf32>
    %70 = arith.mulf %69, %65 : vector<2x128xf32>
    %71 = arith.addf %61, %70 : vector<2x128xf32>
    %cst_40 = arith.constant 3.600000e+01 : f32
    %72 = vector.broadcast %cst_40 : f32 to vector<2x128xf32>
    %73 = arith.subf %17, %72 : vector<2x128xf32>
    %cst_41 = arith.constant 0.000000e+00 : f32
    %74 = vector.broadcast %cst_41 : f32 to vector<2x128xf32>
    %75 = arith.maximumf %73, %74 : vector<2x128xf32>
    %76 = arith.addf %66, %75 : vector<2x128xf32>
    %c0_42 = arith.constant 0 : index
    %c6 = arith.constant 6 : index
    %c0_43 = arith.constant 0 : index
    %c0_44 = arith.constant 0 : index
    %77 = vector.load %arg5[%c0_42, %c6, %c0_43, %c0_44] : memref<8x8x1x128xf32, #tpu.memory_space<vmem>>, vector<1x1x1x128xf32>
    %78 = vector.shape_cast %77 : vector<1x1x1x128xf32> to vector<1x128xf32>
    %79 = vector.broadcast %78 : vector<1x128xf32> to vector<2x128xf32>
    %80 = arith.mulf %79, %75 : vector<2x128xf32>
    %81 = arith.addf %71, %80 : vector<2x128xf32>
    %cst_45 = arith.constant 4.900000e+01 : f32
    %82 = vector.broadcast %cst_45 : f32 to vector<2x128xf32>
    %83 = arith.subf %17, %82 : vector<2x128xf32>
    %cst_46 = arith.constant 0.000000e+00 : f32
    %84 = vector.broadcast %cst_46 : f32 to vector<2x128xf32>
    %85 = arith.maximumf %83, %84 : vector<2x128xf32>
    %86 = arith.addf %76, %85 : vector<2x128xf32>
    %c0_47 = arith.constant 0 : index
    %c7 = arith.constant 7 : index
    %c0_48 = arith.constant 0 : index
    %c0_49 = arith.constant 0 : index
    %87 = vector.load %arg5[%c0_47, %c7, %c0_48, %c0_49] : memref<8x8x1x128xf32, #tpu.memory_space<vmem>>, vector<1x1x1x128xf32>
    %88 = vector.shape_cast %87 : vector<1x1x1x128xf32> to vector<1x128xf32>
    %89 = vector.broadcast %88 : vector<1x128xf32> to vector<2x128xf32>
    %90 = arith.mulf %89, %85 : vector<2x128xf32>
    %91 = arith.addf %81, %90 : vector<2x128xf32>
    %92 = vector.extract_strided_slice %5 {offsets = [0, 0], sizes = [2, 1], strides = [1, 1]} : vector<2x8xf32> to vector<2x1xf32>
    %93 = arith.divf %91, %86 : vector<2x128xf32>
    %94 = vector.broadcast %92 : vector<2x1xf32> to vector<2x128xf32>
    %95 = arith.mulf %94, %93 : vector<2x128xf32>
    %96 = arith.addf %13, %95 : vector<2x128xf32>
    %97 = vector.extract_strided_slice %12 {offsets = [0, 128], sizes = [2, 128], strides = [1, 1]} : vector<2x1024xf32> to vector<2x128xf32>
    %cst_50 = arith.constant 8.000000e+00 : f32
    %98 = vector.broadcast %cst_50 : f32 to vector<2x128xf32>
    %99 = arith.mulf %97, %98 : vector<2x128xf32>
    %100 = arith.mulf %99, %99 : vector<2x128xf32>
    %c1_51 = arith.constant 1 : index
    %c0_52 = arith.constant 0 : index
    %c0_53 = arith.constant 0 : index
    %c0_54 = arith.constant 0 : index
    %101 = vector.load %arg5[%c1_51, %c0_52, %c0_53, %c0_54] : memref<8x8x1x128xf32, #tpu.memory_space<vmem>>, vector<1x1x1x128xf32>
    %102 = vector.shape_cast %101 : vector<1x1x1x128xf32> to vector<1x128xf32>
    %103 = vector.broadcast %102 : vector<1x128xf32> to vector<2x128xf32>
    %104 = arith.mulf %103, %100 : vector<2x128xf32>
    %cst_55 = arith.constant 1.000000e+00 : f32
    %105 = vector.broadcast %cst_55 : f32 to vector<2x128xf32>
    %106 = arith.subf %100, %105 : vector<2x128xf32>
    %cst_56 = arith.constant 0.000000e+00 : f32
    %107 = vector.broadcast %cst_56 : f32 to vector<2x128xf32>
    %108 = arith.maximumf %106, %107 : vector<2x128xf32>
    %109 = arith.addf %100, %108 : vector<2x128xf32>
    %c1_57 = arith.constant 1 : index
    %c1_58 = arith.constant 1 : index
    %c0_59 = arith.constant 0 : index
    %c0_60 = arith.constant 0 : index
    %110 = vector.load %arg5[%c1_57, %c1_58, %c0_59, %c0_60] : memref<8x8x1x128xf32, #tpu.memory_space<vmem>>, vector<1x1x1x128xf32>
    %111 = vector.shape_cast %110 : vector<1x1x1x128xf32> to vector<1x128xf32>
    %112 = vector.broadcast %111 : vector<1x128xf32> to vector<2x128xf32>
    %113 = arith.mulf %112, %108 : vector<2x128xf32>
    %114 = arith.addf %104, %113 : vector<2x128xf32>
    %cst_61 = arith.constant 4.000000e+00 : f32
    %115 = vector.broadcast %cst_61 : f32 to vector<2x128xf32>
    %116 = arith.subf %100, %115 : vector<2x128xf32>
    %cst_62 = arith.constant 0.000000e+00 : f32
    %117 = vector.broadcast %cst_62 : f32 to vector<2x128xf32>
    %118 = arith.maximumf %116, %117 : vector<2x128xf32>
    %119 = arith.addf %109, %118 : vector<2x128xf32>
    %c1_63 = arith.constant 1 : index
    %c2_64 = arith.constant 2 : index
    %c0_65 = arith.constant 0 : index
    %c0_66 = arith.constant 0 : index
    %120 = vector.load %arg5[%c1_63, %c2_64, %c0_65, %c0_66] : memref<8x8x1x128xf32, #tpu.memory_space<vmem>>, vector<1x1x1x128xf32>
    %121 = vector.shape_cast %120 : vector<1x1x1x128xf32> to vector<1x128xf32>
    %122 = vector.broadcast %121 : vector<1x128xf32> to vector<2x128xf32>
    %123 = arith.mulf %122, %118 : vector<2x128xf32>
    %124 = arith.addf %114, %123 : vector<2x128xf32>
    %cst_67 = arith.constant 9.000000e+00 : f32
    %125 = vector.broadcast %cst_67 : f32 to vector<2x128xf32>
    %126 = arith.subf %100, %125 : vector<2x128xf32>
    %cst_68 = arith.constant 0.000000e+00 : f32
    %127 = vector.broadcast %cst_68 : f32 to vector<2x128xf32>
    %128 = arith.maximumf %126, %127 : vector<2x128xf32>
    %129 = arith.addf %119, %128 : vector<2x128xf32>
    %c1_69 = arith.constant 1 : index
    %c3_70 = arith.constant 3 : index
    %c0_71 = arith.constant 0 : index
    %c0_72 = arith.constant 0 : index
    %130 = vector.load %arg5[%c1_69, %c3_70, %c0_71, %c0_72] : memref<8x8x1x128xf32, #tpu.memory_space<vmem>>, vector<1x1x1x128xf32>
    %131 = vector.shape_cast %130 : vector<1x1x1x128xf32> to vector<1x128xf32>
    %132 = vector.broadcast %131 : vector<1x128xf32> to vector<2x128xf32>
    %133 = arith.mulf %132, %128 : vector<2x128xf32>
    %134 = arith.addf %124, %133 : vector<2x128xf32>
    %cst_73 = arith.constant 1.600000e+01 : f32
    %135 = vector.broadcast %cst_73 : f32 to vector<2x128xf32>
    %136 = arith.subf %100, %135 : vector<2x128xf32>
    %cst_74 = arith.constant 0.000000e+00 : f32
    %137 = vector.broadcast %cst_74 : f32 to vector<2x128xf32>
    %138 = arith.maximumf %136, %137 : vector<2x128xf32>
    %139 = arith.addf %129, %138 : vector<2x128xf32>
    %c1_75 = arith.constant 1 : index
    %c4_76 = arith.constant 4 : index
    %c0_77 = arith.constant 0 : index
    %c0_78 = arith.constant 0 : index
    %140 = vector.load %arg5[%c1_75, %c4_76, %c0_77, %c0_78] : memref<8x8x1x128xf32, #tpu.memory_space<vmem>>, vector<1x1x1x128xf32>
    %141 = vector.shape_cast %140 : vector<1x1x1x128xf32> to vector<1x128xf32>
    %142 = vector.broadcast %141 : vector<1x128xf32> to vector<2x128xf32>
    %143 = arith.mulf %142, %138 : vector<2x128xf32>
    %144 = arith.addf %134, %143 : vector<2x128xf32>
    %cst_79 = arith.constant 2.500000e+01 : f32
    %145 = vector.broadcast %cst_79 : f32 to vector<2x128xf32>
    %146 = arith.subf %100, %145 : vector<2x128xf32>
    %cst_80 = arith.constant 0.000000e+00 : f32
    %147 = vector.broadcast %cst_80 : f32 to vector<2x128xf32>
    %148 = arith.maximumf %146, %147 : vector<2x128xf32>
    %149 = arith.addf %139, %148 : vector<2x128xf32>
    %c1_81 = arith.constant 1 : index
    %c5_82 = arith.constant 5 : index
    %c0_83 = arith.constant 0 : index
    %c0_84 = arith.constant 0 : index
    %150 = vector.load %arg5[%c1_81, %c5_82, %c0_83, %c0_84] : memref<8x8x1x128xf32, #tpu.memory_space<vmem>>, vector<1x1x1x128xf32>
    %151 = vector.shape_cast %150 : vector<1x1x1x128xf32> to vector<1x128xf32>
    %152 = vector.broadcast %151 : vector<1x128xf32> to vector<2x128xf32>
    %153 = arith.mulf %152, %148 : vector<2x128xf32>
    %154 = arith.addf %144, %153 : vector<2x128xf32>
    %cst_85 = arith.constant 3.600000e+01 : f32
    %155 = vector.broadcast %cst_85 : f32 to vector<2x128xf32>
    %156 = arith.subf %100, %155 : vector<2x128xf32>
    %cst_86 = arith.constant 0.000000e+00 : f32
    %157 = vector.broadcast %cst_86 : f32 to vector<2x128xf32>
    %158 = arith.maximumf %156, %157 : vector<2x128xf32>
    %159 = arith.addf %149, %158 : vector<2x128xf32>
    %c1_87 = arith.constant 1 : index
    %c6_88 = arith.constant 6 : index
    %c0_89 = arith.constant 0 : index
    %c0_90 = arith.constant 0 : index
    %160 = vector.load %arg5[%c1_87, %c6_88, %c0_89, %c0_90] : memref<8x8x1x128xf32, #tpu.memory_space<vmem>>, vector<1x1x1x128xf32>
    %161 = vector.shape_cast %160 : vector<1x1x1x128xf32> to vector<1x128xf32>
    %162 = vector.broadcast %161 : vector<1x128xf32> to vector<2x128xf32>
    %163 = arith.mulf %162, %158 : vector<2x128xf32>
    %164 = arith.addf %154, %163 : vector<2x128xf32>
    %cst_91 = arith.constant 4.900000e+01 : f32
    %165 = vector.broadcast %cst_91 : f32 to vector<2x128xf32>
    %166 = arith.subf %100, %165 : vector<2x128xf32>
    %cst_92 = arith.constant 0.000000e+00 : f32
    %167 = vector.broadcast %cst_92 : f32 to vector<2x128xf32>
    %168 = arith.maximumf %166, %167 : vector<2x128xf32>
    %169 = arith.addf %159, %168 : vector<2x128xf32>
    %c1_93 = arith.constant 1 : index
    %c7_94 = arith.constant 7 : index
    %c0_95 = arith.constant 0 : index
    %c0_96 = arith.constant 0 : index
    %170 = vector.load %arg5[%c1_93, %c7_94, %c0_95, %c0_96] : memref<8x8x1x128xf32, #tpu.memory_space<vmem>>, vector<1x1x1x128xf32>
    %171 = vector.shape_cast %170 : vector<1x1x1x128xf32> to vector<1x128xf32>
    %172 = vector.broadcast %171 : vector<1x128xf32> to vector<2x128xf32>
    %173 = arith.mulf %172, %168 : vector<2x128xf32>
    %174 = arith.addf %164, %173 : vector<2x128xf32>
    %175 = vector.extract_strided_slice %5 {offsets = [0, 1], sizes = [2, 1], strides = [1, 1]} : vector<2x8xf32> to vector<2x1xf32>
    %176 = arith.divf %174, %169 : vector<2x128xf32>
    %177 = vector.broadcast %175 : vector<2x1xf32> to vector<2x128xf32>
    %178 = arith.mulf %177, %176 : vector<2x128xf32>
    %179 = arith.addf %96, %178 : vector<2x128xf32>
    %180 = vector.extract_strided_slice %12 {offsets = [0, 256], sizes = [2, 128], strides = [1, 1]} : vector<2x1024xf32> to vector<2x128xf32>
    %cst_97 = arith.constant 8.000000e+00 : f32
    %181 = vector.broadcast %cst_97 : f32 to vector<2x128xf32>
    %182 = arith.mulf %180, %181 : vector<2x128xf32>
    %183 = arith.mulf %182, %182 : vector<2x128xf32>
    %c2_98 = arith.constant 2 : index
    %c0_99 = arith.constant 0 : index
    %c0_100 = arith.constant 0 : index
    %c0_101 = arith.constant 0 : index
    %184 = vector.load %arg5[%c2_98, %c0_99, %c0_100, %c0_101] : memref<8x8x1x128xf32, #tpu.memory_space<vmem>>, vector<1x1x1x128xf32>
    %185 = vector.shape_cast %184 : vector<1x1x1x128xf32> to vector<1x128xf32>
    %186 = vector.broadcast %185 : vector<1x128xf32> to vector<2x128xf32>
    %187 = arith.mulf %186, %183 : vector<2x128xf32>
    %cst_102 = arith.constant 1.000000e+00 : f32
    %188 = vector.broadcast %cst_102 : f32 to vector<2x128xf32>
    %189 = arith.subf %183, %188 : vector<2x128xf32>
    %cst_103 = arith.constant 0.000000e+00 : f32
    %190 = vector.broadcast %cst_103 : f32 to vector<2x128xf32>
    %191 = arith.maximumf %189, %190 : vector<2x128xf32>
    %192 = arith.addf %183, %191 : vector<2x128xf32>
    %c2_104 = arith.constant 2 : index
    %c1_105 = arith.constant 1 : index
    %c0_106 = arith.constant 0 : index
    %c0_107 = arith.constant 0 : index
    %193 = vector.load %arg5[%c2_104, %c1_105, %c0_106, %c0_107] : memref<8x8x1x128xf32, #tpu.memory_space<vmem>>, vector<1x1x1x128xf32>
    %194 = vector.shape_cast %193 : vector<1x1x1x128xf32> to vector<1x128xf32>
    %195 = vector.broadcast %194 : vector<1x128xf32> to vector<2x128xf32>
    %196 = arith.mulf %195, %191 : vector<2x128xf32>
    %197 = arith.addf %187, %196 : vector<2x128xf32>
    %cst_108 = arith.constant 4.000000e+00 : f32
    %198 = vector.broadcast %cst_108 : f32 to vector<2x128xf32>
    %199 = arith.subf %183, %198 : vector<2x128xf32>
    %cst_109 = arith.constant 0.000000e+00 : f32
    %200 = vector.broadcast %cst_109 : f32 to vector<2x128xf32>
    %201 = arith.maximumf %199, %200 : vector<2x128xf32>
    %202 = arith.addf %192, %201 : vector<2x128xf32>
    %c2_110 = arith.constant 2 : index
    %c2_111 = arith.constant 2 : index
    %c0_112 = arith.constant 0 : index
    %c0_113 = arith.constant 0 : index
    %203 = vector.load %arg5[%c2_110, %c2_111, %c0_112, %c0_113] : memref<8x8x1x128xf32, #tpu.memory_space<vmem>>, vector<1x1x1x128xf32>
    %204 = vector.shape_cast %203 : vector<1x1x1x128xf32> to vector<1x128xf32>
    %205 = vector.broadcast %204 : vector<1x128xf32> to vector<2x128xf32>
    %206 = arith.mulf %205, %201 : vector<2x128xf32>
    %207 = arith.addf %197, %206 : vector<2x128xf32>
    %cst_114 = arith.constant 9.000000e+00 : f32
    %208 = vector.broadcast %cst_114 : f32 to vector<2x128xf32>
    %209 = arith.subf %183, %208 : vector<2x128xf32>
    %cst_115 = arith.constant 0.000000e+00 : f32
    %210 = vector.broadcast %cst_115 : f32 to vector<2x128xf32>
    %211 = arith.maximumf %209, %210 : vector<2x128xf32>
    %212 = arith.addf %202, %211 : vector<2x128xf32>
    %c2_116 = arith.constant 2 : index
    %c3_117 = arith.constant 3 : index
    %c0_118 = arith.constant 0 : index
    %c0_119 = arith.constant 0 : index
    %213 = vector.load %arg5[%c2_116, %c3_117, %c0_118, %c0_119] : memref<8x8x1x128xf32, #tpu.memory_space<vmem>>, vector<1x1x1x128xf32>
    %214 = vector.shape_cast %213 : vector<1x1x1x128xf32> to vector<1x128xf32>
    %215 = vector.broadcast %214 : vector<1x128xf32> to vector<2x128xf32>
    %216 = arith.mulf %215, %211 : vector<2x128xf32>
    %217 = arith.addf %207, %216 : vector<2x128xf32>
    %cst_120 = arith.constant 1.600000e+01 : f32
    %218 = vector.broadcast %cst_120 : f32 to vector<2x128xf32>
    %219 = arith.subf %183, %218 : vector<2x128xf32>
    %cst_121 = arith.constant 0.000000e+00 : f32
    %220 = vector.broadcast %cst_121 : f32 to vector<2x128xf32>
    %221 = arith.maximumf %219, %220 : vector<2x128xf32>
    %222 = arith.addf %212, %221 : vector<2x128xf32>
    %c2_122 = arith.constant 2 : index
    %c4_123 = arith.constant 4 : index
    %c0_124 = arith.constant 0 : index
    %c0_125 = arith.constant 0 : index
    %223 = vector.load %arg5[%c2_122, %c4_123, %c0_124, %c0_125] : memref<8x8x1x128xf32, #tpu.memory_space<vmem>>, vector<1x1x1x128xf32>
    %224 = vector.shape_cast %223 : vector<1x1x1x128xf32> to vector<1x128xf32>
    %225 = vector.broadcast %224 : vector<1x128xf32> to vector<2x128xf32>
    %226 = arith.mulf %225, %221 : vector<2x128xf32>
    %227 = arith.addf %217, %226 : vector<2x128xf32>
    %cst_126 = arith.constant 2.500000e+01 : f32
    %228 = vector.broadcast %cst_126 : f32 to vector<2x128xf32>
    %229 = arith.subf %183, %228 : vector<2x128xf32>
    %cst_127 = arith.constant 0.000000e+00 : f32
    %230 = vector.broadcast %cst_127 : f32 to vector<2x128xf32>
    %231 = arith.maximumf %229, %230 : vector<2x128xf32>
    %232 = arith.addf %222, %231 : vector<2x128xf32>
    %c2_128 = arith.constant 2 : index
    %c5_129 = arith.constant 5 : index
    %c0_130 = arith.constant 0 : index
    %c0_131 = arith.constant 0 : index
    %233 = vector.load %arg5[%c2_128, %c5_129, %c0_130, %c0_131] : memref<8x8x1x128xf32, #tpu.memory_space<vmem>>, vector<1x1x1x128xf32>
    %234 = vector.shape_cast %233 : vector<1x1x1x128xf32> to vector<1x128xf32>
    %235 = vector.broadcast %234 : vector<1x128xf32> to vector<2x128xf32>
    %236 = arith.mulf %235, %231 : vector<2x128xf32>
    %237 = arith.addf %227, %236 : vector<2x128xf32>
    %cst_132 = arith.constant 3.600000e+01 : f32
    %238 = vector.broadcast %cst_132 : f32 to vector<2x128xf32>
    %239 = arith.subf %183, %238 : vector<2x128xf32>
    %cst_133 = arith.constant 0.000000e+00 : f32
    %240 = vector.broadcast %cst_133 : f32 to vector<2x128xf32>
    %241 = arith.maximumf %239, %240 : vector<2x128xf32>
    %242 = arith.addf %232, %241 : vector<2x128xf32>
    %c2_134 = arith.constant 2 : index
    %c6_135 = arith.constant 6 : index
    %c0_136 = arith.constant 0 : index
    %c0_137 = arith.constant 0 : index
    %243 = vector.load %arg5[%c2_134, %c6_135, %c0_136, %c0_137] : memref<8x8x1x128xf32, #tpu.memory_space<vmem>>, vector<1x1x1x128xf32>
    %244 = vector.shape_cast %243 : vector<1x1x1x128xf32> to vector<1x128xf32>
    %245 = vector.broadcast %244 : vector<1x128xf32> to vector<2x128xf32>
    %246 = arith.mulf %245, %241 : vector<2x128xf32>
    %247 = arith.addf %237, %246 : vector<2x128xf32>
    %cst_138 = arith.constant 4.900000e+01 : f32
    %248 = vector.broadcast %cst_138 : f32 to vector<2x128xf32>
    %249 = arith.subf %183, %248 : vector<2x128xf32>
    %cst_139 = arith.constant 0.000000e+00 : f32
    %250 = vector.broadcast %cst_139 : f32 to vector<2x128xf32>
    %251 = arith.maximumf %249, %250 : vector<2x128xf32>
    %252 = arith.addf %242, %251 : vector<2x128xf32>
    %c2_140 = arith.constant 2 : index
    %c7_141 = arith.constant 7 : index
    %c0_142 = arith.constant 0 : index
    %c0_143 = arith.constant 0 : index
    %253 = vector.load %arg5[%c2_140, %c7_141, %c0_142, %c0_143] : memref<8x8x1x128xf32, #tpu.memory_space<vmem>>, vector<1x1x1x128xf32>
    %254 = vector.shape_cast %253 : vector<1x1x1x128xf32> to vector<1x128xf32>
    %255 = vector.broadcast %254 : vector<1x128xf32> to vector<2x128xf32>
    %256 = arith.mulf %255, %251 : vector<2x128xf32>
    %257 = arith.addf %247, %256 : vector<2x128xf32>
    %258 = vector.extract_strided_slice %5 {offsets = [0, 2], sizes = [2, 1], strides = [1, 1]} : vector<2x8xf32> to vector<2x1xf32>
    %259 = arith.divf %257, %252 : vector<2x128xf32>
    %260 = vector.broadcast %258 : vector<2x1xf32> to vector<2x128xf32>
    %261 = arith.mulf %260, %259 : vector<2x128xf32>
    %262 = arith.addf %179, %261 : vector<2x128xf32>
    %263 = vector.extract_strided_slice %12 {offsets = [0, 384], sizes = [2, 128], strides = [1, 1]} : vector<2x1024xf32> to vector<2x128xf32>
    %cst_144 = arith.constant 8.000000e+00 : f32
    %264 = vector.broadcast %cst_144 : f32 to vector<2x128xf32>
    %265 = arith.mulf %263, %264 : vector<2x128xf32>
    %266 = arith.mulf %265, %265 : vector<2x128xf32>
    %c3_145 = arith.constant 3 : index
    %c0_146 = arith.constant 0 : index
    %c0_147 = arith.constant 0 : index
    %c0_148 = arith.constant 0 : index
    %267 = vector.load %arg5[%c3_145, %c0_146, %c0_147, %c0_148] : memref<8x8x1x128xf32, #tpu.memory_space<vmem>>, vector<1x1x1x128xf32>
    %268 = vector.shape_cast %267 : vector<1x1x1x128xf32> to vector<1x128xf32>
    %269 = vector.broadcast %268 : vector<1x128xf32> to vector<2x128xf32>
    %270 = arith.mulf %269, %266 : vector<2x128xf32>
    %cst_149 = arith.constant 1.000000e+00 : f32
    %271 = vector.broadcast %cst_149 : f32 to vector<2x128xf32>
    %272 = arith.subf %266, %271 : vector<2x128xf32>
    %cst_150 = arith.constant 0.000000e+00 : f32
    %273 = vector.broadcast %cst_150 : f32 to vector<2x128xf32>
    %274 = arith.maximumf %272, %273 : vector<2x128xf32>
    %275 = arith.addf %266, %274 : vector<2x128xf32>
    %c3_151 = arith.constant 3 : index
    %c1_152 = arith.constant 1 : index
    %c0_153 = arith.constant 0 : index
    %c0_154 = arith.constant 0 : index
    %276 = vector.load %arg5[%c3_151, %c1_152, %c0_153, %c0_154] : memref<8x8x1x128xf32, #tpu.memory_space<vmem>>, vector<1x1x1x128xf32>
    %277 = vector.shape_cast %276 : vector<1x1x1x128xf32> to vector<1x128xf32>
    %278 = vector.broadcast %277 : vector<1x128xf32> to vector<2x128xf32>
    %279 = arith.mulf %278, %274 : vector<2x128xf32>
    %280 = arith.addf %270, %279 : vector<2x128xf32>
    %cst_155 = arith.constant 4.000000e+00 : f32
    %281 = vector.broadcast %cst_155 : f32 to vector<2x128xf32>
    %282 = arith.subf %266, %281 : vector<2x128xf32>
    %cst_156 = arith.constant 0.000000e+00 : f32
    %283 = vector.broadcast %cst_156 : f32 to vector<2x128xf32>
    %284 = arith.maximumf %282, %283 : vector<2x128xf32>
    %285 = arith.addf %275, %284 : vector<2x128xf32>
    %c3_157 = arith.constant 3 : index
    %c2_158 = arith.constant 2 : index
    %c0_159 = arith.constant 0 : index
    %c0_160 = arith.constant 0 : index
    %286 = vector.load %arg5[%c3_157, %c2_158, %c0_159, %c0_160] : memref<8x8x1x128xf32, #tpu.memory_space<vmem>>, vector<1x1x1x128xf32>
    %287 = vector.shape_cast %286 : vector<1x1x1x128xf32> to vector<1x128xf32>
    %288 = vector.broadcast %287 : vector<1x128xf32> to vector<2x128xf32>
    %289 = arith.mulf %288, %284 : vector<2x128xf32>
    %290 = arith.addf %280, %289 : vector<2x128xf32>
    %cst_161 = arith.constant 9.000000e+00 : f32
    %291 = vector.broadcast %cst_161 : f32 to vector<2x128xf32>
    %292 = arith.subf %266, %291 : vector<2x128xf32>
    %cst_162 = arith.constant 0.000000e+00 : f32
    %293 = vector.broadcast %cst_162 : f32 to vector<2x128xf32>
    %294 = arith.maximumf %292, %293 : vector<2x128xf32>
    %295 = arith.addf %285, %294 : vector<2x128xf32>
    %c3_163 = arith.constant 3 : index
    %c3_164 = arith.constant 3 : index
    %c0_165 = arith.constant 0 : index
    %c0_166 = arith.constant 0 : index
    %296 = vector.load %arg5[%c3_163, %c3_164, %c0_165, %c0_166] : memref<8x8x1x128xf32, #tpu.memory_space<vmem>>, vector<1x1x1x128xf32>
    %297 = vector.shape_cast %296 : vector<1x1x1x128xf32> to vector<1x128xf32>
    %298 = vector.broadcast %297 : vector<1x128xf32> to vector<2x128xf32>
    %299 = arith.mulf %298, %294 : vector<2x128xf32>
    %300 = arith.addf %290, %299 : vector<2x128xf32>
    %cst_167 = arith.constant 1.600000e+01 : f32
    %301 = vector.broadcast %cst_167 : f32 to vector<2x128xf32>
    %302 = arith.subf %266, %301 : vector<2x128xf32>
    %cst_168 = arith.constant 0.000000e+00 : f32
    %303 = vector.broadcast %cst_168 : f32 to vector<2x128xf32>
    %304 = arith.maximumf %302, %303 : vector<2x128xf32>
    %305 = arith.addf %295, %304 : vector<2x128xf32>
    %c3_169 = arith.constant 3 : index
    %c4_170 = arith.constant 4 : index
    %c0_171 = arith.constant 0 : index
    %c0_172 = arith.constant 0 : index
    %306 = vector.load %arg5[%c3_169, %c4_170, %c0_171, %c0_172] : memref<8x8x1x128xf32, #tpu.memory_space<vmem>>, vector<1x1x1x128xf32>
    %307 = vector.shape_cast %306 : vector<1x1x1x128xf32> to vector<1x128xf32>
    %308 = vector.broadcast %307 : vector<1x128xf32> to vector<2x128xf32>
    %309 = arith.mulf %308, %304 : vector<2x128xf32>
    %310 = arith.addf %300, %309 : vector<2x128xf32>
    %cst_173 = arith.constant 2.500000e+01 : f32
    %311 = vector.broadcast %cst_173 : f32 to vector<2x128xf32>
    %312 = arith.subf %266, %311 : vector<2x128xf32>
    %cst_174 = arith.constant 0.000000e+00 : f32
    %313 = vector.broadcast %cst_174 : f32 to vector<2x128xf32>
    %314 = arith.maximumf %312, %313 : vector<2x128xf32>
    %315 = arith.addf %305, %314 : vector<2x128xf32>
    %c3_175 = arith.constant 3 : index
    %c5_176 = arith.constant 5 : index
    %c0_177 = arith.constant 0 : index
    %c0_178 = arith.constant 0 : index
    %316 = vector.load %arg5[%c3_175, %c5_176, %c0_177, %c0_178] : memref<8x8x1x128xf32, #tpu.memory_space<vmem>>, vector<1x1x1x128xf32>
    %317 = vector.shape_cast %316 : vector<1x1x1x128xf32> to vector<1x128xf32>
    %318 = vector.broadcast %317 : vector<1x128xf32> to vector<2x128xf32>
    %319 = arith.mulf %318, %314 : vector<2x128xf32>
    %320 = arith.addf %310, %319 : vector<2x128xf32>
    %cst_179 = arith.constant 3.600000e+01 : f32
    %321 = vector.broadcast %cst_179 : f32 to vector<2x128xf32>
    %322 = arith.subf %266, %321 : vector<2x128xf32>
    %cst_180 = arith.constant 0.000000e+00 : f32
    %323 = vector.broadcast %cst_180 : f32 to vector<2x128xf32>
    %324 = arith.maximumf %322, %323 : vector<2x128xf32>
    %325 = arith.addf %315, %324 : vector<2x128xf32>
    %c3_181 = arith.constant 3 : index
    %c6_182 = arith.constant 6 : index
    %c0_183 = arith.constant 0 : index
    %c0_184 = arith.constant 0 : index
    %326 = vector.load %arg5[%c3_181, %c6_182, %c0_183, %c0_184] : memref<8x8x1x128xf32, #tpu.memory_space<vmem>>, vector<1x1x1x128xf32>
    %327 = vector.shape_cast %326 : vector<1x1x1x128xf32> to vector<1x128xf32>
    %328 = vector.broadcast %327 : vector<1x128xf32> to vector<2x128xf32>
    %329 = arith.mulf %328, %324 : vector<2x128xf32>
    %330 = arith.addf %320, %329 : vector<2x128xf32>
    %cst_185 = arith.constant 4.900000e+01 : f32
    %331 = vector.broadcast %cst_185 : f32 to vector<2x128xf32>
    %332 = arith.subf %266, %331 : vector<2x128xf32>
    %cst_186 = arith.constant 0.000000e+00 : f32
    %333 = vector.broadcast %cst_186 : f32 to vector<2x128xf32>
    %334 = arith.maximumf %332, %333 : vector<2x128xf32>
    %335 = arith.addf %325, %334 : vector<2x128xf32>
    %c3_187 = arith.constant 3 : index
    %c7_188 = arith.constant 7 : index
    %c0_189 = arith.constant 0 : index
    %c0_190 = arith.constant 0 : index
    %336 = vector.load %arg5[%c3_187, %c7_188, %c0_189, %c0_190] : memref<8x8x1x128xf32, #tpu.memory_space<vmem>>, vector<1x1x1x128xf32>
    %337 = vector.shape_cast %336 : vector<1x1x1x128xf32> to vector<1x128xf32>
    %338 = vector.broadcast %337 : vector<1x128xf32> to vector<2x128xf32>
    %339 = arith.mulf %338, %334 : vector<2x128xf32>
    %340 = arith.addf %330, %339 : vector<2x128xf32>
    %341 = vector.extract_strided_slice %5 {offsets = [0, 3], sizes = [2, 1], strides = [1, 1]} : vector<2x8xf32> to vector<2x1xf32>
    %342 = arith.divf %340, %335 : vector<2x128xf32>
    %343 = vector.broadcast %341 : vector<2x1xf32> to vector<2x128xf32>
    %344 = arith.mulf %343, %342 : vector<2x128xf32>
    %345 = arith.addf %262, %344 : vector<2x128xf32>
    %346 = vector.extract_strided_slice %12 {offsets = [0, 512], sizes = [2, 128], strides = [1, 1]} : vector<2x1024xf32> to vector<2x128xf32>
    %cst_191 = arith.constant 8.000000e+00 : f32
    %347 = vector.broadcast %cst_191 : f32 to vector<2x128xf32>
    %348 = arith.mulf %346, %347 : vector<2x128xf32>
    %349 = arith.mulf %348, %348 : vector<2x128xf32>
    %c4_192 = arith.constant 4 : index
    %c0_193 = arith.constant 0 : index
    %c0_194 = arith.constant 0 : index
    %c0_195 = arith.constant 0 : index
    %350 = vector.load %arg5[%c4_192, %c0_193, %c0_194, %c0_195] : memref<8x8x1x128xf32, #tpu.memory_space<vmem>>, vector<1x1x1x128xf32>
    %351 = vector.shape_cast %350 : vector<1x1x1x128xf32> to vector<1x128xf32>
    %352 = vector.broadcast %351 : vector<1x128xf32> to vector<2x128xf32>
    %353 = arith.mulf %352, %349 : vector<2x128xf32>
    %cst_196 = arith.constant 1.000000e+00 : f32
    %354 = vector.broadcast %cst_196 : f32 to vector<2x128xf32>
    %355 = arith.subf %349, %354 : vector<2x128xf32>
    %cst_197 = arith.constant 0.000000e+00 : f32
    %356 = vector.broadcast %cst_197 : f32 to vector<2x128xf32>
    %357 = arith.maximumf %355, %356 : vector<2x128xf32>
    %358 = arith.addf %349, %357 : vector<2x128xf32>
    %c4_198 = arith.constant 4 : index
    %c1_199 = arith.constant 1 : index
    %c0_200 = arith.constant 0 : index
    %c0_201 = arith.constant 0 : index
    %359 = vector.load %arg5[%c4_198, %c1_199, %c0_200, %c0_201] : memref<8x8x1x128xf32, #tpu.memory_space<vmem>>, vector<1x1x1x128xf32>
    %360 = vector.shape_cast %359 : vector<1x1x1x128xf32> to vector<1x128xf32>
    %361 = vector.broadcast %360 : vector<1x128xf32> to vector<2x128xf32>
    %362 = arith.mulf %361, %357 : vector<2x128xf32>
    %363 = arith.addf %353, %362 : vector<2x128xf32>
    %cst_202 = arith.constant 4.000000e+00 : f32
    %364 = vector.broadcast %cst_202 : f32 to vector<2x128xf32>
    %365 = arith.subf %349, %364 : vector<2x128xf32>
    %cst_203 = arith.constant 0.000000e+00 : f32
    %366 = vector.broadcast %cst_203 : f32 to vector<2x128xf32>
    %367 = arith.maximumf %365, %366 : vector<2x128xf32>
    %368 = arith.addf %358, %367 : vector<2x128xf32>
    %c4_204 = arith.constant 4 : index
    %c2_205 = arith.constant 2 : index
    %c0_206 = arith.constant 0 : index
    %c0_207 = arith.constant 0 : index
    %369 = vector.load %arg5[%c4_204, %c2_205, %c0_206, %c0_207] : memref<8x8x1x128xf32, #tpu.memory_space<vmem>>, vector<1x1x1x128xf32>
    %370 = vector.shape_cast %369 : vector<1x1x1x128xf32> to vector<1x128xf32>
    %371 = vector.broadcast %370 : vector<1x128xf32> to vector<2x128xf32>
    %372 = arith.mulf %371, %367 : vector<2x128xf32>
    %373 = arith.addf %363, %372 : vector<2x128xf32>
    %cst_208 = arith.constant 9.000000e+00 : f32
    %374 = vector.broadcast %cst_208 : f32 to vector<2x128xf32>
    %375 = arith.subf %349, %374 : vector<2x128xf32>
    %cst_209 = arith.constant 0.000000e+00 : f32
    %376 = vector.broadcast %cst_209 : f32 to vector<2x128xf32>
    %377 = arith.maximumf %375, %376 : vector<2x128xf32>
    %378 = arith.addf %368, %377 : vector<2x128xf32>
    %c4_210 = arith.constant 4 : index
    %c3_211 = arith.constant 3 : index
    %c0_212 = arith.constant 0 : index
    %c0_213 = arith.constant 0 : index
    %379 = vector.load %arg5[%c4_210, %c3_211, %c0_212, %c0_213] : memref<8x8x1x128xf32, #tpu.memory_space<vmem>>, vector<1x1x1x128xf32>
    %380 = vector.shape_cast %379 : vector<1x1x1x128xf32> to vector<1x128xf32>
    %381 = vector.broadcast %380 : vector<1x128xf32> to vector<2x128xf32>
    %382 = arith.mulf %381, %377 : vector<2x128xf32>
    %383 = arith.addf %373, %382 : vector<2x128xf32>
    %cst_214 = arith.constant 1.600000e+01 : f32
    %384 = vector.broadcast %cst_214 : f32 to vector<2x128xf32>
    %385 = arith.subf %349, %384 : vector<2x128xf32>
    %cst_215 = arith.constant 0.000000e+00 : f32
    %386 = vector.broadcast %cst_215 : f32 to vector<2x128xf32>
    %387 = arith.maximumf %385, %386 : vector<2x128xf32>
    %388 = arith.addf %378, %387 : vector<2x128xf32>
    %c4_216 = arith.constant 4 : index
    %c4_217 = arith.constant 4 : index
    %c0_218 = arith.constant 0 : index
    %c0_219 = arith.constant 0 : index
    %389 = vector.load %arg5[%c4_216, %c4_217, %c0_218, %c0_219] : memref<8x8x1x128xf32, #tpu.memory_space<vmem>>, vector<1x1x1x128xf32>
    %390 = vector.shape_cast %389 : vector<1x1x1x128xf32> to vector<1x128xf32>
    %391 = vector.broadcast %390 : vector<1x128xf32> to vector<2x128xf32>
    %392 = arith.mulf %391, %387 : vector<2x128xf32>
    %393 = arith.addf %383, %392 : vector<2x128xf32>
    %cst_220 = arith.constant 2.500000e+01 : f32
    %394 = vector.broadcast %cst_220 : f32 to vector<2x128xf32>
    %395 = arith.subf %349, %394 : vector<2x128xf32>
    %cst_221 = arith.constant 0.000000e+00 : f32
    %396 = vector.broadcast %cst_221 : f32 to vector<2x128xf32>
    %397 = arith.maximumf %395, %396 : vector<2x128xf32>
    %398 = arith.addf %388, %397 : vector<2x128xf32>
    %c4_222 = arith.constant 4 : index
    %c5_223 = arith.constant 5 : index
    %c0_224 = arith.constant 0 : index
    %c0_225 = arith.constant 0 : index
    %399 = vector.load %arg5[%c4_222, %c5_223, %c0_224, %c0_225] : memref<8x8x1x128xf32, #tpu.memory_space<vmem>>, vector<1x1x1x128xf32>
    %400 = vector.shape_cast %399 : vector<1x1x1x128xf32> to vector<1x128xf32>
    %401 = vector.broadcast %400 : vector<1x128xf32> to vector<2x128xf32>
    %402 = arith.mulf %401, %397 : vector<2x128xf32>
    %403 = arith.addf %393, %402 : vector<2x128xf32>
    %cst_226 = arith.constant 3.600000e+01 : f32
    %404 = vector.broadcast %cst_226 : f32 to vector<2x128xf32>
    %405 = arith.subf %349, %404 : vector<2x128xf32>
    %cst_227 = arith.constant 0.000000e+00 : f32
    %406 = vector.broadcast %cst_227 : f32 to vector<2x128xf32>
    %407 = arith.maximumf %405, %406 : vector<2x128xf32>
    %408 = arith.addf %398, %407 : vector<2x128xf32>
    %c4_228 = arith.constant 4 : index
    %c6_229 = arith.constant 6 : index
    %c0_230 = arith.constant 0 : index
    %c0_231 = arith.constant 0 : index
    %409 = vector.load %arg5[%c4_228, %c6_229, %c0_230, %c0_231] : memref<8x8x1x128xf32, #tpu.memory_space<vmem>>, vector<1x1x1x128xf32>
    %410 = vector.shape_cast %409 : vector<1x1x1x128xf32> to vector<1x128xf32>
    %411 = vector.broadcast %410 : vector<1x128xf32> to vector<2x128xf32>
    %412 = arith.mulf %411, %407 : vector<2x128xf32>
    %413 = arith.addf %403, %412 : vector<2x128xf32>
    %cst_232 = arith.constant 4.900000e+01 : f32
    %414 = vector.broadcast %cst_232 : f32 to vector<2x128xf32>
    %415 = arith.subf %349, %414 : vector<2x128xf32>
    %cst_233 = arith.constant 0.000000e+00 : f32
    %416 = vector.broadcast %cst_233 : f32 to vector<2x128xf32>
    %417 = arith.maximumf %415, %416 : vector<2x128xf32>
    %418 = arith.addf %408, %417 : vector<2x128xf32>
    %c4_234 = arith.constant 4 : index
    %c7_235 = arith.constant 7 : index
    %c0_236 = arith.constant 0 : index
    %c0_237 = arith.constant 0 : index
    %419 = vector.load %arg5[%c4_234, %c7_235, %c0_236, %c0_237] : memref<8x8x1x128xf32, #tpu.memory_space<vmem>>, vector<1x1x1x128xf32>
    %420 = vector.shape_cast %419 : vector<1x1x1x128xf32> to vector<1x128xf32>
    %421 = vector.broadcast %420 : vector<1x128xf32> to vector<2x128xf32>
    %422 = arith.mulf %421, %417 : vector<2x128xf32>
    %423 = arith.addf %413, %422 : vector<2x128xf32>
    %424 = vector.extract_strided_slice %5 {offsets = [0, 4], sizes = [2, 1], strides = [1, 1]} : vector<2x8xf32> to vector<2x1xf32>
    %425 = arith.divf %423, %418 : vector<2x128xf32>
    %426 = vector.broadcast %424 : vector<2x1xf32> to vector<2x128xf32>
    %427 = arith.mulf %426, %425 : vector<2x128xf32>
    %428 = arith.addf %345, %427 : vector<2x128xf32>
    %429 = vector.extract_strided_slice %12 {offsets = [0, 640], sizes = [2, 128], strides = [1, 1]} : vector<2x1024xf32> to vector<2x128xf32>
    %cst_238 = arith.constant 8.000000e+00 : f32
    %430 = vector.broadcast %cst_238 : f32 to vector<2x128xf32>
    %431 = arith.mulf %429, %430 : vector<2x128xf32>
    %432 = arith.mulf %431, %431 : vector<2x128xf32>
    %c5_239 = arith.constant 5 : index
    %c0_240 = arith.constant 0 : index
    %c0_241 = arith.constant 0 : index
    %c0_242 = arith.constant 0 : index
    %433 = vector.load %arg5[%c5_239, %c0_240, %c0_241, %c0_242] : memref<8x8x1x128xf32, #tpu.memory_space<vmem>>, vector<1x1x1x128xf32>
    %434 = vector.shape_cast %433 : vector<1x1x1x128xf32> to vector<1x128xf32>
    %435 = vector.broadcast %434 : vector<1x128xf32> to vector<2x128xf32>
    %436 = arith.mulf %435, %432 : vector<2x128xf32>
    %cst_243 = arith.constant 1.000000e+00 : f32
    %437 = vector.broadcast %cst_243 : f32 to vector<2x128xf32>
    %438 = arith.subf %432, %437 : vector<2x128xf32>
    %cst_244 = arith.constant 0.000000e+00 : f32
    %439 = vector.broadcast %cst_244 : f32 to vector<2x128xf32>
    %440 = arith.maximumf %438, %439 : vector<2x128xf32>
    %441 = arith.addf %432, %440 : vector<2x128xf32>
    %c5_245 = arith.constant 5 : index
    %c1_246 = arith.constant 1 : index
    %c0_247 = arith.constant 0 : index
    %c0_248 = arith.constant 0 : index
    %442 = vector.load %arg5[%c5_245, %c1_246, %c0_247, %c0_248] : memref<8x8x1x128xf32, #tpu.memory_space<vmem>>, vector<1x1x1x128xf32>
    %443 = vector.shape_cast %442 : vector<1x1x1x128xf32> to vector<1x128xf32>
    %444 = vector.broadcast %443 : vector<1x128xf32> to vector<2x128xf32>
    %445 = arith.mulf %444, %440 : vector<2x128xf32>
    %446 = arith.addf %436, %445 : vector<2x128xf32>
    %cst_249 = arith.constant 4.000000e+00 : f32
    %447 = vector.broadcast %cst_249 : f32 to vector<2x128xf32>
    %448 = arith.subf %432, %447 : vector<2x128xf32>
    %cst_250 = arith.constant 0.000000e+00 : f32
    %449 = vector.broadcast %cst_250 : f32 to vector<2x128xf32>
    %450 = arith.maximumf %448, %449 : vector<2x128xf32>
    %451 = arith.addf %441, %450 : vector<2x128xf32>
    %c5_251 = arith.constant 5 : index
    %c2_252 = arith.constant 2 : index
    %c0_253 = arith.constant 0 : index
    %c0_254 = arith.constant 0 : index
    %452 = vector.load %arg5[%c5_251, %c2_252, %c0_253, %c0_254] : memref<8x8x1x128xf32, #tpu.memory_space<vmem>>, vector<1x1x1x128xf32>
    %453 = vector.shape_cast %452 : vector<1x1x1x128xf32> to vector<1x128xf32>
    %454 = vector.broadcast %453 : vector<1x128xf32> to vector<2x128xf32>
    %455 = arith.mulf %454, %450 : vector<2x128xf32>
    %456 = arith.addf %446, %455 : vector<2x128xf32>
    %cst_255 = arith.constant 9.000000e+00 : f32
    %457 = vector.broadcast %cst_255 : f32 to vector<2x128xf32>
    %458 = arith.subf %432, %457 : vector<2x128xf32>
    %cst_256 = arith.constant 0.000000e+00 : f32
    %459 = vector.broadcast %cst_256 : f32 to vector<2x128xf32>
    %460 = arith.maximumf %458, %459 : vector<2x128xf32>
    %461 = arith.addf %451, %460 : vector<2x128xf32>
    %c5_257 = arith.constant 5 : index
    %c3_258 = arith.constant 3 : index
    %c0_259 = arith.constant 0 : index
    %c0_260 = arith.constant 0 : index
    %462 = vector.load %arg5[%c5_257, %c3_258, %c0_259, %c0_260] : memref<8x8x1x128xf32, #tpu.memory_space<vmem>>, vector<1x1x1x128xf32>
    %463 = vector.shape_cast %462 : vector<1x1x1x128xf32> to vector<1x128xf32>
    %464 = vector.broadcast %463 : vector<1x128xf32> to vector<2x128xf32>
    %465 = arith.mulf %464, %460 : vector<2x128xf32>
    %466 = arith.addf %456, %465 : vector<2x128xf32>
    %cst_261 = arith.constant 1.600000e+01 : f32
    %467 = vector.broadcast %cst_261 : f32 to vector<2x128xf32>
    %468 = arith.subf %432, %467 : vector<2x128xf32>
    %cst_262 = arith.constant 0.000000e+00 : f32
    %469 = vector.broadcast %cst_262 : f32 to vector<2x128xf32>
    %470 = arith.maximumf %468, %469 : vector<2x128xf32>
    %471 = arith.addf %461, %470 : vector<2x128xf32>
    %c5_263 = arith.constant 5 : index
    %c4_264 = arith.constant 4 : index
    %c0_265 = arith.constant 0 : index
    %c0_266 = arith.constant 0 : index
    %472 = vector.load %arg5[%c5_263, %c4_264, %c0_265, %c0_266] : memref<8x8x1x128xf32, #tpu.memory_space<vmem>>, vector<1x1x1x128xf32>
    %473 = vector.shape_cast %472 : vector<1x1x1x128xf32> to vector<1x128xf32>
    %474 = vector.broadcast %473 : vector<1x128xf32> to vector<2x128xf32>
    %475 = arith.mulf %474, %470 : vector<2x128xf32>
    %476 = arith.addf %466, %475 : vector<2x128xf32>
    %cst_267 = arith.constant 2.500000e+01 : f32
    %477 = vector.broadcast %cst_267 : f32 to vector<2x128xf32>
    %478 = arith.subf %432, %477 : vector<2x128xf32>
    %cst_268 = arith.constant 0.000000e+00 : f32
    %479 = vector.broadcast %cst_268 : f32 to vector<2x128xf32>
    %480 = arith.maximumf %478, %479 : vector<2x128xf32>
    %481 = arith.addf %471, %480 : vector<2x128xf32>
    %c5_269 = arith.constant 5 : index
    %c5_270 = arith.constant 5 : index
    %c0_271 = arith.constant 0 : index
    %c0_272 = arith.constant 0 : index
    %482 = vector.load %arg5[%c5_269, %c5_270, %c0_271, %c0_272] : memref<8x8x1x128xf32, #tpu.memory_space<vmem>>, vector<1x1x1x128xf32>
    %483 = vector.shape_cast %482 : vector<1x1x1x128xf32> to vector<1x128xf32>
    %484 = vector.broadcast %483 : vector<1x128xf32> to vector<2x128xf32>
    %485 = arith.mulf %484, %480 : vector<2x128xf32>
    %486 = arith.addf %476, %485 : vector<2x128xf32>
    %cst_273 = arith.constant 3.600000e+01 : f32
    %487 = vector.broadcast %cst_273 : f32 to vector<2x128xf32>
    %488 = arith.subf %432, %487 : vector<2x128xf32>
    %cst_274 = arith.constant 0.000000e+00 : f32
    %489 = vector.broadcast %cst_274 : f32 to vector<2x128xf32>
    %490 = arith.maximumf %488, %489 : vector<2x128xf32>
    %491 = arith.addf %481, %490 : vector<2x128xf32>
    %c5_275 = arith.constant 5 : index
    %c6_276 = arith.constant 6 : index
    %c0_277 = arith.constant 0 : index
    %c0_278 = arith.constant 0 : index
    %492 = vector.load %arg5[%c5_275, %c6_276, %c0_277, %c0_278] : memref<8x8x1x128xf32, #tpu.memory_space<vmem>>, vector<1x1x1x128xf32>
    %493 = vector.shape_cast %492 : vector<1x1x1x128xf32> to vector<1x128xf32>
    %494 = vector.broadcast %493 : vector<1x128xf32> to vector<2x128xf32>
    %495 = arith.mulf %494, %490 : vector<2x128xf32>
    %496 = arith.addf %486, %495 : vector<2x128xf32>
    %cst_279 = arith.constant 4.900000e+01 : f32
    %497 = vector.broadcast %cst_279 : f32 to vector<2x128xf32>
    %498 = arith.subf %432, %497 : vector<2x128xf32>
    %cst_280 = arith.constant 0.000000e+00 : f32
    %499 = vector.broadcast %cst_280 : f32 to vector<2x128xf32>
    %500 = arith.maximumf %498, %499 : vector<2x128xf32>
    %501 = arith.addf %491, %500 : vector<2x128xf32>
    %c5_281 = arith.constant 5 : index
    %c7_282 = arith.constant 7 : index
    %c0_283 = arith.constant 0 : index
    %c0_284 = arith.constant 0 : index
    %502 = vector.load %arg5[%c5_281, %c7_282, %c0_283, %c0_284] : memref<8x8x1x128xf32, #tpu.memory_space<vmem>>, vector<1x1x1x128xf32>
    %503 = vector.shape_cast %502 : vector<1x1x1x128xf32> to vector<1x128xf32>
    %504 = vector.broadcast %503 : vector<1x128xf32> to vector<2x128xf32>
    %505 = arith.mulf %504, %500 : vector<2x128xf32>
    %506 = arith.addf %496, %505 : vector<2x128xf32>
    %507 = vector.extract_strided_slice %5 {offsets = [0, 5], sizes = [2, 1], strides = [1, 1]} : vector<2x8xf32> to vector<2x1xf32>
    %508 = arith.divf %506, %501 : vector<2x128xf32>
    %509 = vector.broadcast %507 : vector<2x1xf32> to vector<2x128xf32>
    %510 = arith.mulf %509, %508 : vector<2x128xf32>
    %511 = arith.addf %428, %510 : vector<2x128xf32>
    %512 = vector.extract_strided_slice %12 {offsets = [0, 768], sizes = [2, 128], strides = [1, 1]} : vector<2x1024xf32> to vector<2x128xf32>
    %cst_285 = arith.constant 8.000000e+00 : f32
    %513 = vector.broadcast %cst_285 : f32 to vector<2x128xf32>
    %514 = arith.mulf %512, %513 : vector<2x128xf32>
    %515 = arith.mulf %514, %514 : vector<2x128xf32>
    %c6_286 = arith.constant 6 : index
    %c0_287 = arith.constant 0 : index
    %c0_288 = arith.constant 0 : index
    %c0_289 = arith.constant 0 : index
    %516 = vector.load %arg5[%c6_286, %c0_287, %c0_288, %c0_289] : memref<8x8x1x128xf32, #tpu.memory_space<vmem>>, vector<1x1x1x128xf32>
    %517 = vector.shape_cast %516 : vector<1x1x1x128xf32> to vector<1x128xf32>
    %518 = vector.broadcast %517 : vector<1x128xf32> to vector<2x128xf32>
    %519 = arith.mulf %518, %515 : vector<2x128xf32>
    %cst_290 = arith.constant 1.000000e+00 : f32
    %520 = vector.broadcast %cst_290 : f32 to vector<2x128xf32>
    %521 = arith.subf %515, %520 : vector<2x128xf32>
    %cst_291 = arith.constant 0.000000e+00 : f32
    %522 = vector.broadcast %cst_291 : f32 to vector<2x128xf32>
    %523 = arith.maximumf %521, %522 : vector<2x128xf32>
    %524 = arith.addf %515, %523 : vector<2x128xf32>
    %c6_292 = arith.constant 6 : index
    %c1_293 = arith.constant 1 : index
    %c0_294 = arith.constant 0 : index
    %c0_295 = arith.constant 0 : index
    %525 = vector.load %arg5[%c6_292, %c1_293, %c0_294, %c0_295] : memref<8x8x1x128xf32, #tpu.memory_space<vmem>>, vector<1x1x1x128xf32>
    %526 = vector.shape_cast %525 : vector<1x1x1x128xf32> to vector<1x128xf32>
    %527 = vector.broadcast %526 : vector<1x128xf32> to vector<2x128xf32>
    %528 = arith.mulf %527, %523 : vector<2x128xf32>
    %529 = arith.addf %519, %528 : vector<2x128xf32>
    %cst_296 = arith.constant 4.000000e+00 : f32
    %530 = vector.broadcast %cst_296 : f32 to vector<2x128xf32>
    %531 = arith.subf %515, %530 : vector<2x128xf32>
    %cst_297 = arith.constant 0.000000e+00 : f32
    %532 = vector.broadcast %cst_297 : f32 to vector<2x128xf32>
    %533 = arith.maximumf %531, %532 : vector<2x128xf32>
    %534 = arith.addf %524, %533 : vector<2x128xf32>
    %c6_298 = arith.constant 6 : index
    %c2_299 = arith.constant 2 : index
    %c0_300 = arith.constant 0 : index
    %c0_301 = arith.constant 0 : index
    %535 = vector.load %arg5[%c6_298, %c2_299, %c0_300, %c0_301] : memref<8x8x1x128xf32, #tpu.memory_space<vmem>>, vector<1x1x1x128xf32>
    %536 = vector.shape_cast %535 : vector<1x1x1x128xf32> to vector<1x128xf32>
    %537 = vector.broadcast %536 : vector<1x128xf32> to vector<2x128xf32>
    %538 = arith.mulf %537, %533 : vector<2x128xf32>
    %539 = arith.addf %529, %538 : vector<2x128xf32>
    %cst_302 = arith.constant 9.000000e+00 : f32
    %540 = vector.broadcast %cst_302 : f32 to vector<2x128xf32>
    %541 = arith.subf %515, %540 : vector<2x128xf32>
    %cst_303 = arith.constant 0.000000e+00 : f32
    %542 = vector.broadcast %cst_303 : f32 to vector<2x128xf32>
    %543 = arith.maximumf %541, %542 : vector<2x128xf32>
    %544 = arith.addf %534, %543 : vector<2x128xf32>
    %c6_304 = arith.constant 6 : index
    %c3_305 = arith.constant 3 : index
    %c0_306 = arith.constant 0 : index
    %c0_307 = arith.constant 0 : index
    %545 = vector.load %arg5[%c6_304, %c3_305, %c0_306, %c0_307] : memref<8x8x1x128xf32, #tpu.memory_space<vmem>>, vector<1x1x1x128xf32>
    %546 = vector.shape_cast %545 : vector<1x1x1x128xf32> to vector<1x128xf32>
    %547 = vector.broadcast %546 : vector<1x128xf32> to vector<2x128xf32>
    %548 = arith.mulf %547, %543 : vector<2x128xf32>
    %549 = arith.addf %539, %548 : vector<2x128xf32>
    %cst_308 = arith.constant 1.600000e+01 : f32
    %550 = vector.broadcast %cst_308 : f32 to vector<2x128xf32>
    %551 = arith.subf %515, %550 : vector<2x128xf32>
    %cst_309 = arith.constant 0.000000e+00 : f32
    %552 = vector.broadcast %cst_309 : f32 to vector<2x128xf32>
    %553 = arith.maximumf %551, %552 : vector<2x128xf32>
    %554 = arith.addf %544, %553 : vector<2x128xf32>
    %c6_310 = arith.constant 6 : index
    %c4_311 = arith.constant 4 : index
    %c0_312 = arith.constant 0 : index
    %c0_313 = arith.constant 0 : index
    %555 = vector.load %arg5[%c6_310, %c4_311, %c0_312, %c0_313] : memref<8x8x1x128xf32, #tpu.memory_space<vmem>>, vector<1x1x1x128xf32>
    %556 = vector.shape_cast %555 : vector<1x1x1x128xf32> to vector<1x128xf32>
    %557 = vector.broadcast %556 : vector<1x128xf32> to vector<2x128xf32>
    %558 = arith.mulf %557, %553 : vector<2x128xf32>
    %559 = arith.addf %549, %558 : vector<2x128xf32>
    %cst_314 = arith.constant 2.500000e+01 : f32
    %560 = vector.broadcast %cst_314 : f32 to vector<2x128xf32>
    %561 = arith.subf %515, %560 : vector<2x128xf32>
    %cst_315 = arith.constant 0.000000e+00 : f32
    %562 = vector.broadcast %cst_315 : f32 to vector<2x128xf32>
    %563 = arith.maximumf %561, %562 : vector<2x128xf32>
    %564 = arith.addf %554, %563 : vector<2x128xf32>
    %c6_316 = arith.constant 6 : index
    %c5_317 = arith.constant 5 : index
    %c0_318 = arith.constant 0 : index
    %c0_319 = arith.constant 0 : index
    %565 = vector.load %arg5[%c6_316, %c5_317, %c0_318, %c0_319] : memref<8x8x1x128xf32, #tpu.memory_space<vmem>>, vector<1x1x1x128xf32>
    %566 = vector.shape_cast %565 : vector<1x1x1x128xf32> to vector<1x128xf32>
    %567 = vector.broadcast %566 : vector<1x128xf32> to vector<2x128xf32>
    %568 = arith.mulf %567, %563 : vector<2x128xf32>
    %569 = arith.addf %559, %568 : vector<2x128xf32>
    %cst_320 = arith.constant 3.600000e+01 : f32
    %570 = vector.broadcast %cst_320 : f32 to vector<2x128xf32>
    %571 = arith.subf %515, %570 : vector<2x128xf32>
    %cst_321 = arith.constant 0.000000e+00 : f32
    %572 = vector.broadcast %cst_321 : f32 to vector<2x128xf32>
    %573 = arith.maximumf %571, %572 : vector<2x128xf32>
    %574 = arith.addf %564, %573 : vector<2x128xf32>
    %c6_322 = arith.constant 6 : index
    %c6_323 = arith.constant 6 : index
    %c0_324 = arith.constant 0 : index
    %c0_325 = arith.constant 0 : index
    %575 = vector.load %arg5[%c6_322, %c6_323, %c0_324, %c0_325] : memref<8x8x1x128xf32, #tpu.memory_space<vmem>>, vector<1x1x1x128xf32>
    %576 = vector.shape_cast %575 : vector<1x1x1x128xf32> to vector<1x128xf32>
    %577 = vector.broadcast %576 : vector<1x128xf32> to vector<2x128xf32>
    %578 = arith.mulf %577, %573 : vector<2x128xf32>
    %579 = arith.addf %569, %578 : vector<2x128xf32>
    %cst_326 = arith.constant 4.900000e+01 : f32
    %580 = vector.broadcast %cst_326 : f32 to vector<2x128xf32>
    %581 = arith.subf %515, %580 : vector<2x128xf32>
    %cst_327 = arith.constant 0.000000e+00 : f32
    %582 = vector.broadcast %cst_327 : f32 to vector<2x128xf32>
    %583 = arith.maximumf %581, %582 : vector<2x128xf32>
    %584 = arith.addf %574, %583 : vector<2x128xf32>
    %c6_328 = arith.constant 6 : index
    %c7_329 = arith.constant 7 : index
    %c0_330 = arith.constant 0 : index
    %c0_331 = arith.constant 0 : index
    %585 = vector.load %arg5[%c6_328, %c7_329, %c0_330, %c0_331] : memref<8x8x1x128xf32, #tpu.memory_space<vmem>>, vector<1x1x1x128xf32>
    %586 = vector.shape_cast %585 : vector<1x1x1x128xf32> to vector<1x128xf32>
    %587 = vector.broadcast %586 : vector<1x128xf32> to vector<2x128xf32>
    %588 = arith.mulf %587, %583 : vector<2x128xf32>
    %589 = arith.addf %579, %588 : vector<2x128xf32>
    %590 = vector.extract_strided_slice %5 {offsets = [0, 6], sizes = [2, 1], strides = [1, 1]} : vector<2x8xf32> to vector<2x1xf32>
    %591 = arith.divf %589, %584 : vector<2x128xf32>
    %592 = vector.broadcast %590 : vector<2x1xf32> to vector<2x128xf32>
    %593 = arith.mulf %592, %591 : vector<2x128xf32>
    %594 = arith.addf %511, %593 : vector<2x128xf32>
    %595 = vector.extract_strided_slice %12 {offsets = [0, 896], sizes = [2, 128], strides = [1, 1]} : vector<2x1024xf32> to vector<2x128xf32>
    %cst_332 = arith.constant 8.000000e+00 : f32
    %596 = vector.broadcast %cst_332 : f32 to vector<2x128xf32>
    %597 = arith.mulf %595, %596 : vector<2x128xf32>
    %598 = arith.mulf %597, %597 : vector<2x128xf32>
    %c7_333 = arith.constant 7 : index
    %c0_334 = arith.constant 0 : index
    %c0_335 = arith.constant 0 : index
    %c0_336 = arith.constant 0 : index
    %599 = vector.load %arg5[%c7_333, %c0_334, %c0_335, %c0_336] : memref<8x8x1x128xf32, #tpu.memory_space<vmem>>, vector<1x1x1x128xf32>
    %600 = vector.shape_cast %599 : vector<1x1x1x128xf32> to vector<1x128xf32>
    %601 = vector.broadcast %600 : vector<1x128xf32> to vector<2x128xf32>
    %602 = arith.mulf %601, %598 : vector<2x128xf32>
    %cst_337 = arith.constant 1.000000e+00 : f32
    %603 = vector.broadcast %cst_337 : f32 to vector<2x128xf32>
    %604 = arith.subf %598, %603 : vector<2x128xf32>
    %cst_338 = arith.constant 0.000000e+00 : f32
    %605 = vector.broadcast %cst_338 : f32 to vector<2x128xf32>
    %606 = arith.maximumf %604, %605 : vector<2x128xf32>
    %607 = arith.addf %598, %606 : vector<2x128xf32>
    %c7_339 = arith.constant 7 : index
    %c1_340 = arith.constant 1 : index
    %c0_341 = arith.constant 0 : index
    %c0_342 = arith.constant 0 : index
    %608 = vector.load %arg5[%c7_339, %c1_340, %c0_341, %c0_342] : memref<8x8x1x128xf32, #tpu.memory_space<vmem>>, vector<1x1x1x128xf32>
    %609 = vector.shape_cast %608 : vector<1x1x1x128xf32> to vector<1x128xf32>
    %610 = vector.broadcast %609 : vector<1x128xf32> to vector<2x128xf32>
    %611 = arith.mulf %610, %606 : vector<2x128xf32>
    %612 = arith.addf %602, %611 : vector<2x128xf32>
    %cst_343 = arith.constant 4.000000e+00 : f32
    %613 = vector.broadcast %cst_343 : f32 to vector<2x128xf32>
    %614 = arith.subf %598, %613 : vector<2x128xf32>
    %cst_344 = arith.constant 0.000000e+00 : f32
    %615 = vector.broadcast %cst_344 : f32 to vector<2x128xf32>
    %616 = arith.maximumf %614, %615 : vector<2x128xf32>
    %617 = arith.addf %607, %616 : vector<2x128xf32>
    %c7_345 = arith.constant 7 : index
    %c2_346 = arith.constant 2 : index
    %c0_347 = arith.constant 0 : index
    %c0_348 = arith.constant 0 : index
    %618 = vector.load %arg5[%c7_345, %c2_346, %c0_347, %c0_348] : memref<8x8x1x128xf32, #tpu.memory_space<vmem>>, vector<1x1x1x128xf32>
    %619 = vector.shape_cast %618 : vector<1x1x1x128xf32> to vector<1x128xf32>
    %620 = vector.broadcast %619 : vector<1x128xf32> to vector<2x128xf32>
    %621 = arith.mulf %620, %616 : vector<2x128xf32>
    %622 = arith.addf %612, %621 : vector<2x128xf32>
    %cst_349 = arith.constant 9.000000e+00 : f32
    %623 = vector.broadcast %cst_349 : f32 to vector<2x128xf32>
    %624 = arith.subf %598, %623 : vector<2x128xf32>
    %cst_350 = arith.constant 0.000000e+00 : f32
    %625 = vector.broadcast %cst_350 : f32 to vector<2x128xf32>
    %626 = arith.maximumf %624, %625 : vector<2x128xf32>
    %627 = arith.addf %617, %626 : vector<2x128xf32>
    %c7_351 = arith.constant 7 : index
    %c3_352 = arith.constant 3 : index
    %c0_353 = arith.constant 0 : index
    %c0_354 = arith.constant 0 : index
    %628 = vector.load %arg5[%c7_351, %c3_352, %c0_353, %c0_354] : memref<8x8x1x128xf32, #tpu.memory_space<vmem>>, vector<1x1x1x128xf32>
    %629 = vector.shape_cast %628 : vector<1x1x1x128xf32> to vector<1x128xf32>
    %630 = vector.broadcast %629 : vector<1x128xf32> to vector<2x128xf32>
    %631 = arith.mulf %630, %626 : vector<2x128xf32>
    %632 = arith.addf %622, %631 : vector<2x128xf32>
    %cst_355 = arith.constant 1.600000e+01 : f32
    %633 = vector.broadcast %cst_355 : f32 to vector<2x128xf32>
    %634 = arith.subf %598, %633 : vector<2x128xf32>
    %cst_356 = arith.constant 0.000000e+00 : f32
    %635 = vector.broadcast %cst_356 : f32 to vector<2x128xf32>
    %636 = arith.maximumf %634, %635 : vector<2x128xf32>
    %637 = arith.addf %627, %636 : vector<2x128xf32>
    %c7_357 = arith.constant 7 : index
    %c4_358 = arith.constant 4 : index
    %c0_359 = arith.constant 0 : index
    %c0_360 = arith.constant 0 : index
    %638 = vector.load %arg5[%c7_357, %c4_358, %c0_359, %c0_360] : memref<8x8x1x128xf32, #tpu.memory_space<vmem>>, vector<1x1x1x128xf32>
    %639 = vector.shape_cast %638 : vector<1x1x1x128xf32> to vector<1x128xf32>
    %640 = vector.broadcast %639 : vector<1x128xf32> to vector<2x128xf32>
    %641 = arith.mulf %640, %636 : vector<2x128xf32>
    %642 = arith.addf %632, %641 : vector<2x128xf32>
    %cst_361 = arith.constant 2.500000e+01 : f32
    %643 = vector.broadcast %cst_361 : f32 to vector<2x128xf32>
    %644 = arith.subf %598, %643 : vector<2x128xf32>
    %cst_362 = arith.constant 0.000000e+00 : f32
    %645 = vector.broadcast %cst_362 : f32 to vector<2x128xf32>
    %646 = arith.maximumf %644, %645 : vector<2x128xf32>
    %647 = arith.addf %637, %646 : vector<2x128xf32>
    %c7_363 = arith.constant 7 : index
    %c5_364 = arith.constant 5 : index
    %c0_365 = arith.constant 0 : index
    %c0_366 = arith.constant 0 : index
    %648 = vector.load %arg5[%c7_363, %c5_364, %c0_365, %c0_366] : memref<8x8x1x128xf32, #tpu.memory_space<vmem>>, vector<1x1x1x128xf32>
    %649 = vector.shape_cast %648 : vector<1x1x1x128xf32> to vector<1x128xf32>
    %650 = vector.broadcast %649 : vector<1x128xf32> to vector<2x128xf32>
    %651 = arith.mulf %650, %646 : vector<2x128xf32>
    %652 = arith.addf %642, %651 : vector<2x128xf32>
    %cst_367 = arith.constant 3.600000e+01 : f32
    %653 = vector.broadcast %cst_367 : f32 to vector<2x128xf32>
    %654 = arith.subf %598, %653 : vector<2x128xf32>
    %cst_368 = arith.constant 0.000000e+00 : f32
    %655 = vector.broadcast %cst_368 : f32 to vector<2x128xf32>
    %656 = arith.maximumf %654, %655 : vector<2x128xf32>
    %657 = arith.addf %647, %656 : vector<2x128xf32>
    %c7_369 = arith.constant 7 : index
    %c6_370 = arith.constant 6 : index
    %c0_371 = arith.constant 0 : index
    %c0_372 = arith.constant 0 : index
    %658 = vector.load %arg5[%c7_369, %c6_370, %c0_371, %c0_372] : memref<8x8x1x128xf32, #tpu.memory_space<vmem>>, vector<1x1x1x128xf32>
    %659 = vector.shape_cast %658 : vector<1x1x1x128xf32> to vector<1x128xf32>
    %660 = vector.broadcast %659 : vector<1x128xf32> to vector<2x128xf32>
    %661 = arith.mulf %660, %656 : vector<2x128xf32>
    %662 = arith.addf %652, %661 : vector<2x128xf32>
    %cst_373 = arith.constant 4.900000e+01 : f32
    %663 = vector.broadcast %cst_373 : f32 to vector<2x128xf32>
    %664 = arith.subf %598, %663 : vector<2x128xf32>
    %cst_374 = arith.constant 0.000000e+00 : f32
    %665 = vector.broadcast %cst_374 : f32 to vector<2x128xf32>
    %666 = arith.maximumf %664, %665 : vector<2x128xf32>
    %667 = arith.addf %657, %666 : vector<2x128xf32>
    %c7_375 = arith.constant 7 : index
    %c7_376 = arith.constant 7 : index
    %c0_377 = arith.constant 0 : index
    %c0_378 = arith.constant 0 : index
    %668 = vector.load %arg5[%c7_375, %c7_376, %c0_377, %c0_378] : memref<8x8x1x128xf32, #tpu.memory_space<vmem>>, vector<1x1x1x128xf32>
    %669 = vector.shape_cast %668 : vector<1x1x1x128xf32> to vector<1x128xf32>
    %670 = vector.broadcast %669 : vector<1x128xf32> to vector<2x128xf32>
    %671 = arith.mulf %670, %666 : vector<2x128xf32>
    %672 = arith.addf %662, %671 : vector<2x128xf32>
    %673 = vector.extract_strided_slice %5 {offsets = [0, 7], sizes = [2, 1], strides = [1, 1]} : vector<2x8xf32> to vector<2x1xf32>
    %674 = arith.divf %672, %667 : vector<2x128xf32>
    %675 = vector.broadcast %673 : vector<2x1xf32> to vector<2x128xf32>
    %676 = arith.mulf %675, %674 : vector<2x128xf32>
    %677 = arith.addf %594, %676 : vector<2x128xf32>
    %c0_379 = arith.constant 0 : index
    %c0_380 = arith.constant 0 : index
    %678 = vector.load %arg6[%c0_379, %c0_380] : memref<2x128xf32, #tpu.memory_space<vmem>>, vector<2x128xf32>
    tpu.vector_store %arg6[%c0_379, %c0_380], %677 {strides = array<i32>} : memref<2x128xf32, #tpu.memory_space<vmem>>, vector<2x128xf32>,
    return
  }
  func.func @transform_0(%arg0: i32) -> (i32, i32) {
    %c0_i32 = arith.constant 0 : i32
    %c0_i32_0 = arith.constant 0 : i32
    return %arg0, %c0_i32 : i32, i32
  }
  func.func @transform_1(%arg0: i32) -> (i32, i32) {
    %c0_i32 = arith.constant 0 : i32
    %c0_i32_0 = arith.constant 0 : i32
    %c0_i32_1 = arith.constant 0 : i32
    return %c0_i32, %c0_i32_0 : i32, i32
  }
  func.func @transform_2(%arg0: i32) -> (i32, i32) {
    %c0_i32 = arith.constant 0 : i32
    %c0_i32_0 = arith.constant 0 : i32
    %c0_i32_1 = arith.constant 0 : i32
    return %c0_i32, %c0_i32_0 : i32, i32
  }
  func.func @transform_3(%arg0: i32) -> (i32, i32) {
    %c0_i32 = arith.constant 0 : i32
    %c0_i32_0 = arith.constant 0 : i32
    %c0_i32_1 = arith.constant 0 : i32
    return %c0_i32, %c0_i32_0 : i32, i32
  }
  func.func @transform_4(%arg0: i32) -> (i32, i32, i32, i32) {
    %c0_i32 = arith.constant 0 : i32
    %c0_i32_0 = arith.constant 0 : i32
    %c0_i32_1 = arith.constant 0 : i32
    %c0_i32_2 = arith.constant 0 : i32
    %c0_i32_3 = arith.constant 0 : i32
    return %c0_i32, %c0_i32_0, %c0_i32_1, %c0_i32_2 : i32, i32, i32, i32
  }
  func.func @transform_5(%arg0: i32) -> (i32, i32) {
    %c0_i32 = arith.constant 0 : i32
    %c0_i32_0 = arith.constant 0 : i32
    return %arg0, %c0_i32 : i32, i32
  }
}

</mosaic_0001>

<llo_original>
// kernel: tpu_custom_call.1
$region0: #{tpu_custom_call.1}
  #allocation0 [shape = 'u32[]', space=smem, size = 0x4, offset = 0x4, fixed_abs, tag = 'smem constant byte address 0x4 - core index']
  #allocation1 [shape = 'u32[144,128]{1,0:T(1,128)}', space=vmem, size = 0x12000, scoped, tag = 'internal scratch']
  %s0 = inlined_call_operand.vmem [shape: f32[2,128], index: 0, kind: input, shape index: {}]
  %s1 = inlined_call_operand.vmem [shape: f32[128,8], index: 1, kind: input, shape index: {}]
  %s2 = inlined_call_operand.vmem [shape: f32[1,8], index: 2, kind: input, shape index: {}]
  %s3 = inlined_call_operand.vmem [shape: f32[8,1024], index: 3, kind: input, shape index: {}]
  %s4 = inlined_call_operand.vmem [shape: f32[8,8,1,128], index: 4, kind: input, shape index: {}]
  %s5 = inlined_call_operand.hbm [shape: f32[2,128], index: 5, kind: output, shape index: {}]
  %s6 = sld [smem:[#allocation0]]
  $region30: #{tpu_custom_call.1} parent=0
    _
  %s8 = ssub.s32 1, %s6
  %s9 = scalar_select 0, %s8, %s6
  $region1: #{tpu_custom_call.1} parent=0
    #allocation2 [shape = 'u8[1024]{0}', space=vmem, size = 0x400, scoped, tag = 'output window, operand 0, single buffered']
    #allocation3 [shape = 's32[1]{0}', space=sflag, size = 0x4, scoped, tag = 'scoped memory for tpu_custom_call.1']
    %10 = vsyncpa [#allocation3], 0
    // Predicated region
    $region2: #{tpu_custom_call.1} parent=1 // pred_check
      _
    $region3: #{tpu_custom_call.1} parent=1 // pred_check_branch
      %12 = sbr.rel (0) target = $region5
    $region4: #{tpu_custom_call.1} parent=1 // pred_region
      _
    $region5: #{tpu_custom_call.1} parent=1 // pred_fallthru
      _
    // Predicated region
    $region6: #{tpu_custom_call.1} parent=1 // pred_check
      _
    $region7: #{tpu_custom_call.1} parent=1 // pred_check_branch
      %14 = sbr.rel (0) target = $region9
    $region8: #{tpu_custom_call.1} parent=1 // pred_region
      _
    $region9: #{tpu_custom_call.1} parent=1 // pred_fallthru
      _
    // Predicated region
    $region10: #{tpu_custom_call.1} parent=1 // pred_check
      _
    $region11: #{tpu_custom_call.1} parent=1 // pred_check_branch
      %16 = sbr.rel (0) target = $region13
    $region12: #{tpu_custom_call.1} parent=1 // pred_region
      _
    $region13: #{tpu_custom_call.1} parent=1 // pred_fallthru
      _
    // Predicated region
    $region14: #{tpu_custom_call.1} parent=1 // pred_check
      _
    $region15: #{tpu_custom_call.1} parent=1 // pred_check_branch
      %18 = sbr.rel (0) target = $region17
    $region16: #{tpu_custom_call.1} parent=1 // pred_region
      _
    $region17: #{tpu_custom_call.1} parent=1 // pred_fallthru
      _
    // Predicated region
    $region18: #{tpu_custom_call.1} parent=1 // pred_check
      _
    $region19: #{tpu_custom_call.1} parent=1 // pred_check_branch
      %20 = sbr.rel (0) target = $region21
    $region20: #{tpu_custom_call.1} parent=1 // pred_region
      _
    $region21: #{tpu_custom_call.1} parent=1 // pred_fallthru
      _
    %v21 = vld [vmem:[%s0] sm:$0x3]
    %v22 = vld [vmem:[%s1] sm:$0xff]
    %v23 = vld [vmem:[%s1 + $0x8] sm:$0xff]
    %v24 = vld [vmem:[%s1 + $0x10] sm:$0xff]
    %v25 = vld [vmem:[%s1 + $0x18] sm:$0xff]
    %v26 = vld [vmem:[%s1 + $0x20] sm:$0xff]
    %v27 = vld [vmem:[%s1 + $0x28] sm:$0xff]
    %v28 = vld [vmem:[%s1 + $0x30] sm:$0xff]
    %v29 = vld [vmem:[%s1 + $0x38] sm:$0xff]
    %v30 = vld [vmem:[%s1 + $0x40] sm:$0xff]
    %v31 = vld [vmem:[%s1 + $0x48] sm:$0xff]
    %v32 = vld [vmem:[%s1 + $0x50] sm:$0xff]
    %v33 = vld [vmem:[%s1 + $0x58] sm:$0xff]
    %v34 = vld [vmem:[%s1 + $0x60] sm:$0xff]
    %v35 = vld [vmem:[%s1 + $0x68] sm:$0xff]
    %v36 = vld [vmem:[%s1 + $0x70] sm:$0xff]
    %v37 = vld [vmem:[%s1 + $0x78] sm:$0xff]
    %v38 = vld [vmem:[%s2] sm:$0x1]
    %v40 = vlaneseq
    %v41 = vshrl.u32 %v40, 7
    %v42 = vsub.s32 0, %v41
    %v43 = vrot.slane %v38, %v42
    %45 = vmatprep.subr.mxu0 0.0
    %46 = vmatpush1.msra.mxu0 %v22
    %47 = vmatprep.subr.mxu0 0.0
    %48 = vmatpush1.msra.mxu0 %v23
    %49 = vmatprep.subr.mxu0 0.0
    %50 = vmatpush1.msra.mxu0 %v24
    %51 = vmatprep.subr.mxu0 0.0
    %52 = vmatpush1.msra.mxu0 %v25
    %53 = vmatprep.subr.mxu0 0.0
    %54 = vmatpush1.msra.mxu0 %v26
    %55 = vmatprep.subr.mxu0 0.0
    %56 = vmatpush1.msra.mxu0 %v27
    %57 = vmatprep.subr.mxu0 0.0
    %58 = vmatpush1.msra.mxu0 %v28
    %59 = vmatprep.subr.mxu0 0.0
    %60 = vmatpush1.msra.mxu0 %v29
    %61 = vmatprep.subr.mxu0 0.0
    %62 = vmatpush1.msra.mxu0 %v30
    %63 = vmatprep.subr.mxu0 0.0
    %64 = vmatpush1.msra.mxu0 %v31
    %65 = vmatprep.subr.mxu0 0.0
    %66 = vmatpush1.msra.mxu0 %v32
    %67 = vmatprep.subr.mxu0 0.0
    %68 = vmatpush1.msra.mxu0 %v33
    %69 = vmatprep.subr.mxu0 0.0
    %70 = vmatpush1.msra.mxu0 %v34
    %71 = vmatprep.subr.mxu0 0.0
    %72 = vmatpush1.msra.mxu0 %v35
    %73 = vmatprep.subr.mxu0 0.0
    %74 = vmatpush1.msra.mxu0 %v36
    %75 = vmatprep.subr.mxu0 0.0
    %76 = vmatpush1.msra.mxu0 %v37
    %77 = vmatprep.subr.mxu0 0.0
    %78 = vmatpush1.msra.mxu0 0.0
    %79 = vmatprep.subr.mxu0 0.0
    %80 = vmatpush1.msra.mxu0 0.0
    %81 = vmatprep.subr.mxu0 0.0
    %82 = vmatpush1.msra.mxu0 0.0
    %83 = vmatprep.subr.mxu0 0.0
    %84 = vmatpush1.msra.mxu0 0.0
    %85 = vmatprep.subr.mxu0 0.0
    %86 = vmatpush1.msra.mxu0 0.0
    %87 = vmatprep.subr.mxu0 0.0
    %88 = vmatpush1.msra.mxu0 0.0
    %89 = vmatprep.subr.mxu0 0.0
    %90 = vmatpush1.msra.mxu0 0.0
    %91 = vmatprep.subr.mxu0 0.0
    %92 = vmatpush1.msra.mxu0 0.0
    %93 = vmatprep.subr.mxu0 0.0
    %94 = vmatpush1.msra.mxu0 0.0
    %95 = vmatprep.subr.mxu0 0.0
    %96 = vmatpush1.msra.mxu0 0.0
    %97 = vmatprep.subr.mxu0 0.0
    %98 = vmatpush1.msra.mxu0 0.0
    %99 = vmatprep.subr.mxu0 0.0
    %100 = vmatpush1.msra.mxu0 0.0
    %101 = vmatprep.subr.mxu0 0.0
    %102 = vmatpush1.msra.mxu0 0.0
    %103 = vmatprep.subr.mxu0 0.0
    %104 = vmatpush1.msra.mxu0 0.0
    %105 = vmatprep.subr.mxu0 0.0
    %106 = vmatpush1.msra.mxu0 0.0
    %107 = vmatprep.subr.mxu0 0.0
    %108 = vmatpush1.msra.mxu0 0.0
    %109 = vmatprep.mubr.f32.mxu0 0.0
    %110 = vmatmul.mubr.f32.gmra.mrb[0].mxu0 %v21
    %v111 = vpop.f32.mrb[0].mxu0
    %v112 = vadd.f32 %v43, %v111
    %v113 = vpop.f32.mrb[0].mxu0
    %114 = vdwg.mxu0
    %v115 = vld [vmem:[%s3] sm:$0xff]
    %v116 = vld [vmem:[%s3 + $0x8] sm:$0xff]
    %v117 = vld [vmem:[%s3 + $0x10] sm:$0xff]
    %v118 = vld [vmem:[%s3 + $0x18] sm:$0xff]
    %v119 = vld [vmem:[%s3 + $0x20] sm:$0xff]
    %v120 = vld [vmem:[%s3 + $0x28] sm:$0xff]
    %v121 = vld [vmem:[%s3 + $0x30] sm:$0xff]
    %v122 = vld [vmem:[%s3 + $0x38] sm:$0xff]
    %vm123 = vcmask 64512
    %v125 = vsel %vm123, %v112, 0
    %127 = vmatprep.subr.mxu0 %v116
    %128 = vmatpush1.msra.mxu0 %v115
    %129 = vmatprep.subr.mxu0 0.0
    %130 = vmatpush1.msra.mxu0 0.0
    %131 = vmatprep.subr.mxu0 0.0
    %132 = vmatpush1.msra.mxu0 0.0
    %133 = vmatprep.subr.mxu0 0.0
    %134 = vmatpush1.msra.mxu0 0.0
    %135 = vmatprep.subr.mxu0 0.0
    %136 = vmatpush1.msra.mxu0 0.0
    %137 = vmatprep.subr.mxu0 0.0
    %138 = vmatpush1.msra.mxu0 0.0
    %139 = vmatprep.subr.mxu0 0.0
    %140 = vmatpush1.msra.mxu0 0.0
    %141 = vmatprep.subr.mxu0 0.0
    %142 = vmatpush1.msra.mxu0 0.0
    %143 = vmatprep.subr.mxu0 0.0
    %144 = vmatpush1.msra.mxu0 0.0
    %145 = vmatprep.subr.mxu0 0.0
    %146 = vmatpush1.msra.mxu0 0.0
    %147 = vmatprep.subr.mxu0 0.0
    %148 = vmatpush1.msra.mxu0 0.0
    %149 = vmatprep.subr.mxu0 0.0
    %150 = vmatpush1.msra.mxu0 0.0
    %151 = vmatprep.subr.mxu0 0.0
    %152 = vmatpush1.msra.mxu0 0.0
    %153 = vmatprep.subr.mxu0 0.0
    %154 = vmatpush1.msra.mxu0 0.0
    %155 = vmatprep.subr.mxu0 0.0
    %156 = vmatpush1.msra.mxu0 0.0
    %157 = vmatprep.subr.mxu0 0.0
    %158 = vmatpush1.msra.mxu0 0.0
    %159 = vmatprep.subr.mxu0 0.0
    %160 = vmatpush1.msra.mxu0 0.0
    %161 = vmatprep.subr.mxu0 0.0
    %162 = vmatpush1.msra.mxu0 0.0
    %163 = vmatprep.subr.mxu0 0.0
    %164 = vmatpush1.msra.mxu0 0.0
    %165 = vmatprep.subr.mxu0 0.0
    %166 = vmatpush1.msra.mxu0 0.0
    %167 = vmatprep.subr.mxu0 0.0
    %168 = vmatpush1.msra.mxu0 0.0
    %169 = vmatprep.subr.mxu0 0.0
    %170 = vmatpush1.msra.mxu0 0.0
    %171 = vmatprep.subr.mxu0 0.0
    %172 = vmatpush1.msra.mxu0 0.0
    %173 = vmatprep.subr.mxu0 0.0
    %174 = vmatpush1.msra.mxu0 0.0
    %175 = vmatprep.subr.mxu0 0.0
    %176 = vmatpush1.msra.mxu0 0.0
    %177 = vmatprep.subr.mxu0 0.0
    %178 = vmatpush1.msra.mxu0 0.0
    %179 = vmatprep.subr.mxu0 0.0
    %180 = vmatpush1.msra.mxu0 0.0
    %181 = vmatprep.subr.mxu0 0.0
    %182 = vmatpush1.msra.mxu0 0.0
    %183 = vmatprep.subr.mxu0 0.0
    %184 = vmatpush1.msra.mxu0 0.0
    %185 = vmatprep.subr.mxu0 0.0
    %186 = vmatpush1.msra.mxu0 0.0
    %187 = vmatprep.subr.mxu0 0.0
    %188 = vmatpush1.msra.mxu0 0.0
    %189 = vmatprep.subr.mxu0 0.0
    %190 = vmatpush1.msra.mxu0 0.0
    %191 = vmatprep.mubr.f32.mxu0 0.0
    %192 = vmatmul.mubr.f32.gmra.mrb[0].mxu0 %v125
    %v193 = vpop.f32.mrb[0].mxu0
    %v194 = vadd.f32 0.0, %v193
    %v195 = vpop.f32.mrb[0].mxu0
    %v196 = vadd.f32 0.0, %v195
    %197 = vdwg.mxu0
    %198 = vmatprep.subr.mxu0 %v118
    %199 = vmatpush1.msra.mxu0 %v117
    %200 = vmatprep.subr.mxu0 0.0
    %201 = vmatpush1.msra.mxu0 0.0
    %202 = vmatprep.subr.mxu0 0.0
    %203 = vmatpush1.msra.mxu0 0.0
    %204 = vmatprep.subr.mxu0 0.0
    %205 = vmatpush1.msra.mxu0 0.0
    %206 = vmatprep.subr.mxu0 0.0
    %207 = vmatpush1.msra.mxu0 0.0
    %208 = vmatprep.subr.mxu0 0.0
    %209 = vmatpush1.msra.mxu0 0.0
    %210 = vmatprep.subr.mxu0 0.0
    %211 = vmatpush1.msra.mxu0 0.0
    %212 = vmatprep.subr.mxu0 0.0
    %213 = vmatpush1.msra.mxu0 0.0
    %214 = vmatprep.subr.mxu0 0.0
    %215 = vmatpush1.msra.mxu0 0.0
    %216 = vmatprep.subr.mxu0 0.0
    %217 = vmatpush1.msra.mxu0 0.0
    %218 = vmatprep.subr.mxu0 0.0
    %219 = vmatpush1.msra.mxu0 0.0
    %220 = vmatprep.subr.mxu0 0.0
    %221 = vmatpush1.msra.mxu0 0.0
    %222 = vmatprep.subr.mxu0 0.0
    %223 = vmatpush1.msra.mxu0 0.0
    %224 = vmatprep.subr.mxu0 0.0
    %225 = vmatpush1.msra.mxu0 0.0
    %226 = vmatprep.subr.mxu0 0.0
    %227 = vmatpush1.msra.mxu0 0.0
    %228 = vmatprep.subr.mxu0 0.0
    %229 = vmatpush1.msra.mxu0 0.0
    %230 = vmatprep.subr.mxu0 0.0
    %231 = vmatpush1.msra.mxu0 0.0
    %232 = vmatprep.subr.mxu0 0.0
    %233 = vmatpush1.msra.mxu0 0.0
    %234 = vmatprep.subr.mxu0 0.0
    %235 = vmatpush1.msra.mxu0 0.0
    %236 = vmatprep.subr.mxu0 0.0
    %237 = vmatpush1.msra.mxu0 0.0
    %238 = vmatprep.subr.mxu0 0.0
    %239 = vmatpush1.msra.mxu0 0.0
    %240 = vmatprep.subr.mxu0 0.0
    %241 = vmatpush1.msra.mxu0 0.0
    %242 = vmatprep.subr.mxu0 0.0
    %243 = vmatpush1.msra.mxu0 0.0
    %244 = vmatprep.subr.mxu0 0.0
    %245 = vmatpush1.msra.mxu0 0.0
    %246 = vmatprep.subr.mxu0 0.0
    %247 = vmatpush1.msra.mxu0 0.0
    %248 = vmatprep.subr.mxu0 0.0
    %249 = vmatpush1.msra.mxu0 0.0
    %250 = vmatprep.subr.mxu0 0.0
    %251 = vmatpush1.msra.mxu0 0.0
    %252 = vmatprep.subr.mxu0 0.0
    %253 = vmatpush1.msra.mxu0 0.0
    %254 = vmatprep.subr.mxu0 0.0
    %255 = vmatpush1.msra.mxu0 0.0
    %256 = vmatprep.subr.mxu0 0.0
    %257 = vmatpush1.msra.mxu0 0.0
    %258 = vmatprep.subr.mxu0 0.0
    %259 = vmatpush1.msra.mxu0 0.0
    %260 = vmatprep.subr.mxu0 0.0
    %261 = vmatpush1.msra.mxu0 0.0
    %262 = vmatprep.mubr.f32.mxu0 0.0
    %263 = vmatmul.mubr.f32.gmra.mrb[0].mxu0 %v125
    %v264 = vpop.f32.mrb[0].mxu0
    %v265 = vadd.f32 0.0, %v264
    %v266 = vpop.f32.mrb[0].mxu0
    %v267 = vadd.f32 0.0, %v266
    %268 = vdwg.mxu0
    %269 = vmatprep.subr.mxu0 %v120
    %270 = vmatpush1.msra.mxu0 %v119
    %271 = vmatprep.subr.mxu0 0.0
    %272 = vmatpush1.msra.mxu0 0.0
    %273 = vmatprep.subr.mxu0 0.0
    %274 = vmatpush1.msra.mxu0 0.0
    %275 = vmatprep.subr.mxu0 0.0
    %276 = vmatpush1.msra.mxu0 0.0
    %277 = vmatprep.subr.mxu0 0.0
    %278 = vmatpush1.msra.mxu0 0.0
    %279 = vmatprep.subr.mxu0 0.0
    %280 = vmatpush1.msra.mxu0 0.0
    %281 = vmatprep.subr.mxu0 0.0
    %282 = vmatpush1.msra.mxu0 0.0
    %283 = vmatprep.subr.mxu0 0.0
    %284 = vmatpush1.msra.mxu0 0.0
    %285 = vmatprep.subr.mxu0 0.0
    %286 = vmatpush1.msra.mxu0 0.0
    %287 = vmatprep.subr.mxu0 0.0
    %288 = vmatpush1.msra.mxu0 0.0
    %289 = vmatprep.subr.mxu0 0.0
    %290 = vmatpush1.msra.mxu0 0.0
    %291 = vmatprep.subr.mxu0 0.0
    %292 = vmatpush1.msra.mxu0 0.0
    %293 = vmatprep.subr.mxu0 0.0
    %294 = vmatpush1.msra.mxu0 0.0
    %295 = vmatprep.subr.mxu0 0.0
    %296 = vmatpush1.msra.mxu0 0.0
    %297 = vmatprep.subr.mxu0 0.0
    %298 = vmatpush1.msra.mxu0 0.0
    %299 = vmatprep.subr.mxu0 0.0
    %300 = vmatpush1.msra.mxu0 0.0
    %301 = vmatprep.subr.mxu0 0.0
    %302 = vmatpush1.msra.mxu0 0.0
    %303 = vmatprep.subr.mxu0 0.0
    %304 = vmatpush1.msra.mxu0 0.0
    %305 = vmatprep.subr.mxu0 0.0
    %306 = vmatpush1.msra.mxu0 0.0
    %307 = vmatprep.subr.mxu0 0.0
    %308 = vmatpush1.msra.mxu0 0.0
    %309 = vmatprep.subr.mxu0 0.0
    %310 = vmatpush1.msra.mxu0 0.0
    %311 = vmatprep.subr.mxu0 0.0
    %312 = vmatpush1.msra.mxu0 0.0
    %313 = vmatprep.subr.mxu0 0.0
    %314 = vmatpush1.msra.mxu0 0.0
    %315 = vmatprep.subr.mxu0 0.0
    %316 = vmatpush1.msra.mxu0 0.0
    %317 = vmatprep.subr.mxu0 0.0
    %318 = vmatpush1.msra.mxu0 0.0
    %319 = vmatprep.subr.mxu0 0.0
    %320 = vmatpush1.msra.mxu0 0.0
    %321 = vmatprep.subr.mxu0 0.0
    %322 = vmatpush1.msra.mxu0 0.0
    %323 = vmatprep.subr.mxu0 0.0
    %324 = vmatpush1.msra.mxu0 0.0
    %325 = vmatprep.subr.mxu0 0.0
    %326 = vmatpush1.msra.mxu0 0.0
    %327 = vmatprep.subr.mxu0 0.0
    %328 = vmatpush1.msra.mxu0 0.0
    %329 = vmatprep.subr.mxu0 0.0
    %330 = vmatpush1.msra.mxu0 0.0
    %331 = vmatprep.subr.mxu0 0.0
    %332 = vmatpush1.msra.mxu0 0.0
    %333 = vmatprep.mubr.f32.mxu0 0.0
    %334 = vmatmul.mubr.f32.gmra.mrb[0].mxu0 %v125
    %v335 = vpop.f32.mrb[0].mxu0
    %v336 = vadd.f32 0.0, %v335
    %v337 = vpop.f32.mrb[0].mxu0
    %v338 = vadd.f32 0.0, %v337
    %339 = vdwg.mxu0
    %340 = vmatprep.subr.mxu0 %v122
    %341 = vmatpush1.msra.mxu0 %v121
    %342 = vmatprep.subr.mxu0 0.0
    %343 = vmatpush1.msra.mxu0 0.0
    %344 = vmatprep.subr.mxu0 0.0
    %345 = vmatpush1.msra.mxu0 0.0
    %346 = vmatprep.subr.mxu0 0.0
    %347 = vmatpush1.msra.mxu0 0.0
    %348 = vmatprep.subr.mxu0 0.0
    %349 = vmatpush1.msra.mxu0 0.0
    %350 = vmatprep.subr.mxu0 0.0
    %351 = vmatpush1.msra.mxu0 0.0
    %352 = vmatprep.subr.mxu0 0.0
    %353 = vmatpush1.msra.mxu0 0.0
    %354 = vmatprep.subr.mxu0 0.0
    %355 = vmatpush1.msra.mxu0 0.0
    %356 = vmatprep.subr.mxu0 0.0
    %357 = vmatpush1.msra.mxu0 0.0
    %358 = vmatprep.subr.mxu0 0.0
    %359 = vmatpush1.msra.mxu0 0.0
    %360 = vmatprep.subr.mxu0 0.0
    %361 = vmatpush1.msra.mxu0 0.0
    %362 = vmatprep.subr.mxu0 0.0
    %363 = vmatpush1.msra.mxu0 0.0
    %364 = vmatprep.subr.mxu0 0.0
    %365 = vmatpush1.msra.mxu0 0.0
    %366 = vmatprep.subr.mxu0 0.0
    %367 = vmatpush1.msra.mxu0 0.0
    %368 = vmatprep.subr.mxu0 0.0
    %369 = vmatpush1.msra.mxu0 0.0
    %370 = vmatprep.subr.mxu0 0.0
    %371 = vmatpush1.msra.mxu0 0.0
    %372 = vmatprep.subr.mxu0 0.0
    %373 = vmatpush1.msra.mxu0 0.0
    %374 = vmatprep.subr.mxu0 0.0
    %375 = vmatpush1.msra.mxu0 0.0
    %376 = vmatprep.subr.mxu0 0.0
    %377 = vmatpush1.msra.mxu0 0.0
    %378 = vmatprep.subr.mxu0 0.0
    %379 = vmatpush1.msra.mxu0 0.0
    %380 = vmatprep.subr.mxu0 0.0
    %381 = vmatpush1.msra.mxu0 0.0
    %382 = vmatprep.subr.mxu0 0.0
    %383 = vmatpush1.msra.mxu0 0.0
    %384 = vmatprep.subr.mxu0 0.0
    %385 = vmatpush1.msra.mxu0 0.0
    %386 = vmatprep.subr.mxu0 0.0
    %387 = vmatpush1.msra.mxu0 0.0
    %388 = vmatprep.subr.mxu0 0.0
    %389 = vmatpush1.msra.mxu0 0.0
    %390 = vmatprep.subr.mxu0 0.0
    %391 = vmatpush1.msra.mxu0 0.0
    %392 = vmatprep.subr.mxu0 0.0
    %393 = vmatpush1.msra.mxu0 0.0
    %394 = vmatprep.subr.mxu0 0.0
    %395 = vmatpush1.msra.mxu0 0.0
    %396 = vmatprep.subr.mxu0 0.0
    %397 = vmatpush1.msra.mxu0 0.0
    %398 = vmatprep.subr.mxu0 0.0
    %399 = vmatpush1.msra.mxu0 0.0
    %400 = vmatprep.subr.mxu0 0.0
    %401 = vmatpush1.msra.mxu0 0.0
    %402 = vmatprep.subr.mxu0 0.0
    %403 = vmatpush1.msra.mxu0 0.0
    %404 = vmatprep.mubr.f32.mxu0 0.0
    %405 = vmatmul.mubr.f32.gmra.mrb[0].mxu0 %v125
    %v406 = vpop.f32.mrb[0].mxu0
    %v407 = vadd.f32 0.0, %v406
    %v408 = vpop.f32.mrb[0].mxu0
    %v409 = vadd.f32 0.0, %v408
    %410 = vdwg.mxu0
    %v411 = vxor.u32 %v194, 2147483648
    %v412 = vxor.u32 %v196, 2147483648
    %v413 = vxor.u32 %v265, 2147483648
    %v414 = vxor.u32 %v267, 2147483648
    %v415 = vxor.u32 %v336, 2147483648
    %v416 = vxor.u32 %v338, 2147483648
    %v417 = vxor.u32 %v407, 2147483648
    %v418 = vxor.u32 %v409, 2147483648
    %v419 = vmul.f32 %v411, 1.442695
    %v420 = vpow.pop %v419
    %v421 = vmul.f32 %v412, 1.442695
    %v422 = vpow.pop %v421
    %v423 = vmul.f32 %v413, 1.442695
    %v424 = vpow.pop %v423
    %v425 = vmul.f32 %v414, 1.442695
    %v426 = vpow.pop %v425
    %v427 = vmul.f32 %v415, 1.442695
    %v428 = vpow.pop %v427
    %v429 = vmul.f32 %v416, 1.442695
    %v430 = vpow.pop %v429
    %v431 = vmul.f32 %v417, 1.442695
    %v432 = vpow.pop %v431
    %v433 = vmul.f32 %v418, 1.442695
    %v434 = vpow.pop %v433
    %v435 = vadd.f32 %v420, 1.0
    %v436 = vadd.f32 %v422, 1.0
    %v437 = vadd.f32 %v424, 1.0
    %v438 = vadd.f32 %v426, 1.0
    %v439 = vadd.f32 %v428, 1.0
    %v440 = vadd.f32 %v430, 1.0
    %v441 = vadd.f32 %v432, 1.0
    %v442 = vadd.f32 %v434, 1.0
    %v443 = vrcp.pop %v435
    %v444 = vmul.f32 1.0, %v443
    %v445 = vrcp.pop %v436
    %v446 = vmul.f32 1.0, %v445
    %v447 = vrcp.pop %v437
    %v448 = vmul.f32 1.0, %v447
    %v449 = vrcp.pop %v438
    %v450 = vmul.f32 1.0, %v449
    %v451 = vrcp.pop %v439
    %v452 = vmul.f32 1.0, %v451
    %v453 = vrcp.pop %v440
    %v454 = vmul.f32 1.0, %v453
    %v455 = vrcp.pop %v441
    %v456 = vmul.f32 1.0, %v455
    %v457 = vrcp.pop %v442
    %v458 = vmul.f32 1.0, %v457
    %v459 = vmul.f32 %v444, 8.0
    %v460 = vmul.f32 %v459, %v459
    %v461 = vld [vmem:[%s4] sm:$0x1]
    %v463 = vlaneseq
    %v464 = vshrl.u32 %v463, 7
    %v465 = vsub.s32 0, %v464
    %v466 = vrot.slane %v461, %v465
    %v468 = vmul.f32 %v466, %v460
    %v469 = vsub.f32 %v460, 1.0
    %v470 = vmax.f32 %v469, 0.0
    %v471 = vadd.f32 %v460, %v470
    %s472 = scalar_lea.vmem %s4, 1
    %v473 = vld [vmem:[%s472] sm:$0x1]
    %v475 = vlaneseq
    %v476 = vshrl.u32 %v475, 7
    %v477 = vsub.s32 0, %v476
    %v478 = vrot.slane %v473, %v477
    %v480 = vmul.f32 %v478, %v470
    %v481 = vadd.f32 %v468, %v480
    %v482 = vsub.f32 %v460, 4.0
    %v483 = vmax.f32 %v482, 0.0
    %v484 = vadd.f32 %v471, %v483
    %s485 = scalar_lea.vmem %s4, 2
    %v486 = vld [vmem:[%s485] sm:$0x1]
    %v488 = vlaneseq
    %v489 = vshrl.u32 %v488, 7
    %v490 = vsub.s32 0, %v489
    %v491 = vrot.slane %v486, %v490
    %v493 = vmul.f32 %v491, %v483
    %v494 = vadd.f32 %v481, %v493
    %v495 = vsub.f32 %v460, 9.0
    %v496 = vmax.f32 %v495, 0.0
    %v497 = vadd.f32 %v484, %v496
    %s498 = scalar_lea.vmem %s4, 3
    %v499 = vld [vmem:[%s498] sm:$0x1]
    %v501 = vlaneseq
    %v502 = vshrl.u32 %v501, 7
    %v503 = vsub.s32 0, %v502
    %v504 = vrot.slane %v499, %v503
    %v506 = vmul.f32 %v504, %v496
    %v507 = vadd.f32 %v494, %v506
    %v508 = vsub.f32 %v460, 16.0
    %v509 = vmax.f32 %v508, 0.0
    %v510 = vadd.f32 %v497, %v509
    %s511 = scalar_lea.vmem %s4, 4
    %v512 = vld [vmem:[%s511] sm:$0x1]
    %v514 = vlaneseq
    %v515 = vshrl.u32 %v514, 7
    %v516 = vsub.s32 0, %v515
    %v517 = vrot.slane %v512, %v516
    %v519 = vmul.f32 %v517, %v509
    %v520 = vadd.f32 %v507, %v519
    %v521 = vsub.f32 %v460, 25.0
    %v522 = vmax.f32 %v521, 0.0
    %v523 = vadd.f32 %v510, %v522
    %s524 = scalar_lea.vmem %s4, 5
    %v525 = vld [vmem:[%s524] sm:$0x1]
    %v527 = vlaneseq
    %v528 = vshrl.u32 %v527, 7
    %v529 = vsub.s32 0, %v528
    %v530 = vrot.slane %v525, %v529
    %v532 = vmul.f32 %v530, %v522
    %v533 = vadd.f32 %v520, %v532
    %v534 = vsub.f32 %v460, 36.0
    %v535 = vmax.f32 %v534, 0.0
    %v536 = vadd.f32 %v523, %v535
    %s537 = scalar_lea.vmem %s4, 6
    %v538 = vld [vmem:[%s537] sm:$0x1]
    %v540 = vlaneseq
    %v541 = vshrl.u32 %v540, 7
    %v542 = vsub.s32 0, %v541
    %v543 = vrot.slane %v538, %v542
    %v545 = vmul.f32 %v543, %v535
    %v546 = vadd.f32 %v533, %v545
    %v547 = vsub.f32 %v460, 49.0
    %v548 = vmax.f32 %v547, 0.0
    %v549 = vadd.f32 %v536, %v548
    %s550 = scalar_lea.vmem %s4, 7
    %v551 = vld [vmem:[%s550] sm:$0x1]
    %v553 = vlaneseq
    %v554 = vshrl.u32 %v553, 7
    %v555 = vsub.s32 0, %v554
    %v556 = vrot.slane %v551, %v555
    %v558 = vmul.f32 %v556, %v548
    %v559 = vadd.f32 %v546, %v558
    %v560 = vrcp.pop %v549
    %v561 = vmul.f32 %v559, %v560
    %562 = vset.pattern.permute.xlu0 0
    %563 = vperm.xlu0 %562, %v112
    %v564 = vpop.permute.xlu0 %563
    %v566 = vmul.f32 %v564, %v561
    %v567 = vadd.f32 %v566, 0.0
    %v568 = vmul.f32 %v446, 8.0
    %v569 = vmul.f32 %v568, %v568
    %s570 = scalar_lea.vmem %s4, 8
    %v571 = vld [vmem:[%s570] sm:$0x1]
    %v573 = vlaneseq
    %v574 = vshrl.u32 %v573, 7
    %v575 = vsub.s32 0, %v574
    %v576 = vrot.slane %v571, %v575
    %v578 = vmul.f32 %v576, %v569
    %v579 = vsub.f32 %v569, 1.0
    %v580 = vmax.f32 %v579, 0.0
    %v581 = vadd.f32 %v569, %v580
    %s582 = scalar_lea.vmem %s4, 9
    %v583 = vld [vmem:[%s582] sm:$0x1]
    %v585 = vlaneseq
    %v586 = vshrl.u32 %v585, 7
    %v587 = vsub.s32 0, %v586
    %v588 = vrot.slane %v583, %v587
    %v590 = vmul.f32 %v588, %v580
    %v591 = vadd.f32 %v578, %v590
    %v592 = vsub.f32 %v569, 4.0
    %v593 = vmax.f32 %v592, 0.0
    %v594 = vadd.f32 %v581, %v593
    %s595 = scalar_lea.vmem %s4, 10
    %v596 = vld [vmem:[%s595] sm:$0x1]
    %v598 = vlaneseq
    %v599 = vshrl.u32 %v598, 7
    %v600 = vsub.s32 0, %v599
    %v601 = vrot.slane %v596, %v600
    %v603 = vmul.f32 %v601, %v593
    %v604 = vadd.f32 %v591, %v603
    %v605 = vsub.f32 %v569, 9.0
    %v606 = vmax.f32 %v605, 0.0
    %v607 = vadd.f32 %v594, %v606
    %s608 = scalar_lea.vmem %s4, 11
    %v609 = vld [vmem:[%s608] sm:$0x1]
    %v611 = vlaneseq
    %v612 = vshrl.u32 %v611, 7
    %v613 = vsub.s32 0, %v612
    %v614 = vrot.slane %v609, %v613
    %v616 = vmul.f32 %v614, %v606
    %v617 = vadd.f32 %v604, %v616
    %v618 = vsub.f32 %v569, 16.0
    %v619 = vmax.f32 %v618, 0.0
    %v620 = vadd.f32 %v607, %v619
    %s621 = scalar_lea.vmem %s4, 12
    %v622 = vld [vmem:[%s621] sm:$0x1]
    %v624 = vlaneseq
    %v625 = vshrl.u32 %v624, 7
    %v626 = vsub.s32 0, %v625
    %v627 = vrot.slane %v622, %v626
    %v629 = vmul.f32 %v627, %v619
    %v630 = vadd.f32 %v617, %v629
    %v631 = vsub.f32 %v569, 25.0
    %v632 = vmax.f32 %v631, 0.0
    %v633 = vadd.f32 %v620, %v632
    %s634 = scalar_lea.vmem %s4, 13
    %v635 = vld [vmem:[%s634] sm:$0x1]
    %v637 = vlaneseq
    %v638 = vshrl.u32 %v637, 7
    %v639 = vsub.s32 0, %v638
    %v640 = vrot.slane %v635, %v639
    %v642 = vmul.f32 %v640, %v632
    %v643 = vadd.f32 %v630, %v642
    %v644 = vsub.f32 %v569, 36.0
    %v645 = vmax.f32 %v644, 0.0
    %v646 = vadd.f32 %v633, %v645
    %s647 = scalar_lea.vmem %s4, 14
    %v648 = vld [vmem:[%s647] sm:$0x1]
    %v650 = vlaneseq
    %v651 = vshrl.u32 %v650, 7
    %v652 = vsub.s32 0, %v651
    %v653 = vrot.slane %v648, %v652
    %v655 = vmul.f32 %v653, %v645
    %v656 = vadd.f32 %v643, %v655
    %v657 = vsub.f32 %v569, 49.0
    %v658 = vmax.f32 %v657, 0.0
    %v659 = vadd.f32 %v646, %v658
    %s660 = scalar_lea.vmem %s4, 15
    %v661 = vld [vmem:[%s660] sm:$0x1]
    %v663 = vlaneseq
    %v664 = vshrl.u32 %v663, 7
    %v665 = vsub.s32 0, %v664
    %v666 = vrot.slane %v661, %v665
    %v668 = vmul.f32 %v666, %v658
    %v669 = vadd.f32 %v656, %v668
    %v670 = vrcp.pop %v659
    %v671 = vmul.f32 %v669, %v670
    %672 = vset.pattern.permute.xlu0 1
    %673 = vperm.xlu0 %672, %v112
    %v674 = vpop.permute.xlu0 %673
    %v676 = vmul.f32 %v674, %v671
    %v677 = vadd.f32 %v567, %v676
    %v678 = vmul.f32 %v448, 8.0
    %v679 = vmul.f32 %v678, %v678
    %s680 = scalar_lea.vmem %s4, 16
    %v681 = vld [vmem:[%s680] sm:$0x1]
    %v683 = vlaneseq
    %v684 = vshrl.u32 %v683, 7
    %v685 = vsub.s32 0, %v684
    %v686 = vrot.slane %v681, %v685
    %v688 = vmul.f32 %v686, %v679
    %v689 = vsub.f32 %v679, 1.0
    %v690 = vmax.f32 %v689, 0.0
    %v691 = vadd.f32 %v679, %v690
    %s692 = scalar_lea.vmem %s4, 17
    %v693 = vld [vmem:[%s692] sm:$0x1]
    %v695 = vlaneseq
    %v696 = vshrl.u32 %v695, 7
    %v697 = vsub.s32 0, %v696
    %v698 = vrot.slane %v693, %v697
    %v700 = vmul.f32 %v698, %v690
    %v701 = vadd.f32 %v688, %v700
    %v702 = vsub.f32 %v679, 4.0
    %v703 = vmax.f32 %v702, 0.0
    %v704 = vadd.f32 %v691, %v703
    %s705 = scalar_lea.vmem %s4, 18
    %v706 = vld [vmem:[%s705] sm:$0x1]
    %v708 = vlaneseq
    %v709 = vshrl.u32 %v708, 7
    %v710 = vsub.s32 0, %v709
    %v711 = vrot.slane %v706, %v710
    %v713 = vmul.f32 %v711, %v703
    %v714 = vadd.f32 %v701, %v713
    %v715 = vsub.f32 %v679, 9.0
    %v716 = vmax.f32 %v715, 0.0
    %v717 = vadd.f32 %v704, %v716
    %s718 = scalar_lea.vmem %s4, 19
    %v719 = vld [vmem:[%s718] sm:$0x1]
    %v721 = vlaneseq
    %v722 = vshrl.u32 %v721, 7
    %v723 = vsub.s32 0, %v722
    %v724 = vrot.slane %v719, %v723
    %v726 = vmul.f32 %v724, %v716
    %v727 = vadd.f32 %v714, %v726
    %v728 = vsub.f32 %v679, 16.0
    %v729 = vmax.f32 %v728, 0.0
    %v730 = vadd.f32 %v717, %v729
    %s731 = scalar_lea.vmem %s4, 20
    %v732 = vld [vmem:[%s731] sm:$0x1]
    %v734 = vlaneseq
    %v735 = vshrl.u32 %v734, 7
    %v736 = vsub.s32 0, %v735
    %v737 = vrot.slane %v732, %v736
    %v739 = vmul.f32 %v737, %v729
    %v740 = vadd.f32 %v727, %v739
    %v741 = vsub.f32 %v679, 25.0
    %v742 = vmax.f32 %v741, 0.0
    %v743 = vadd.f32 %v730, %v742
    %s744 = scalar_lea.vmem %s4, 21
    %v745 = vld [vmem:[%s744] sm:$0x1]
    %v747 = vlaneseq
    %v748 = vshrl.u32 %v747, 7
    %v749 = vsub.s32 0, %v748
    %v750 = vrot.slane %v745, %v749
    %v752 = vmul.f32 %v750, %v742
    %v753 = vadd.f32 %v740, %v752
    %v754 = vsub.f32 %v679, 36.0
    %v755 = vmax.f32 %v754, 0.0
    %v756 = vadd.f32 %v743, %v755
    %s757 = scalar_lea.vmem %s4, 22
    %v758 = vld [vmem:[%s757] sm:$0x1]
    %v760 = vlaneseq
    %v761 = vshrl.u32 %v760, 7
    %v762 = vsub.s32 0, %v761
    %v763 = vrot.slane %v758, %v762
    %v765 = vmul.f32 %v763, %v755
    %v766 = vadd.f32 %v753, %v765
    %v767 = vsub.f32 %v679, 49.0
    %v768 = vmax.f32 %v767, 0.0
    %v769 = vadd.f32 %v756, %v768
    %s770 = scalar_lea.vmem %s4, 23
    %v771 = vld [vmem:[%s770] sm:$0x1]
    %v773 = vlaneseq
    %v774 = vshrl.u32 %v773, 7
    %v775 = vsub.s32 0, %v774
    %v776 = vrot.slane %v771, %v775
    %v778 = vmul.f32 %v776, %v768
    %v779 = vadd.f32 %v766, %v778
    %v780 = vrcp.pop %v769
    %v781 = vmul.f32 %v779, %v780
    %782 = vset.pattern.permute.xlu0 2
    %783 = vperm.xlu0 %782, %v112
    %v784 = vpop.permute.xlu0 %783
    %v786 = vmul.f32 %v784, %v781
    %v787 = vadd.f32 %v677, %v786
    %v788 = vmul.f32 %v450, 8.0
    %v789 = vmul.f32 %v788, %v788
    %s790 = scalar_lea.vmem %s4, 24
    %v791 = vld [vmem:[%s790] sm:$0x1]
    %v793 = vlaneseq
    %v794 = vshrl.u32 %v793, 7
    %v795 = vsub.s32 0, %v794
    %v796 = vrot.slane %v791, %v795
    %v798 = vmul.f32 %v796, %v789
    %v799 = vsub.f32 %v789, 1.0
    %v800 = vmax.f32 %v799, 0.0
    %v801 = vadd.f32 %v789, %v800
    %s802 = scalar_lea.vmem %s4, 25
    %v803 = vld [vmem:[%s802] sm:$0x1]
    %v805 = vlaneseq
    %v806 = vshrl.u32 %v805, 7
    %v807 = vsub.s32 0, %v806
    %v808 = vrot.slane %v803, %v807
    %v810 = vmul.f32 %v808, %v800
    %v811 = vadd.f32 %v798, %v810
    %v812 = vsub.f32 %v789, 4.0
    %v813 = vmax.f32 %v812, 0.0
    %v814 = vadd.f32 %v801, %v813
    %s815 = scalar_lea.vmem %s4, 26
    %v816 = vld [vmem:[%s815] sm:$0x1]
    %v818 = vlaneseq
    %v819 = vshrl.u32 %v818, 7
    %v820 = vsub.s32 0, %v819
    %v821 = vrot.slane %v816, %v820
    %v823 = vmul.f32 %v821, %v813
    %v824 = vadd.f32 %v811, %v823
    %v825 = vsub.f32 %v789, 9.0
    %v826 = vmax.f32 %v825, 0.0
    %v827 = vadd.f32 %v814, %v826
    %s828 = scalar_lea.vmem %s4, 27
    %v829 = vld [vmem:[%s828] sm:$0x1]
    %v831 = vlaneseq
    %v832 = vshrl.u32 %v831, 7
    %v833 = vsub.s32 0, %v832
    %v834 = vrot.slane %v829, %v833
    %v836 = vmul.f32 %v834, %v826
    %v837 = vadd.f32 %v824, %v836
    %v838 = vsub.f32 %v789, 16.0
    %v839 = vmax.f32 %v838, 0.0
    %v840 = vadd.f32 %v827, %v839
    %s841 = scalar_lea.vmem %s4, 28
    %v842 = vld [vmem:[%s841] sm:$0x1]
    %v844 = vlaneseq
    %v845 = vshrl.u32 %v844, 7
    %v846 = vsub.s32 0, %v845
    %v847 = vrot.slane %v842, %v846
    %v849 = vmul.f32 %v847, %v839
    %v850 = vadd.f32 %v837, %v849
    %v851 = vsub.f32 %v789, 25.0
    %v852 = vmax.f32 %v851, 0.0
    %v853 = vadd.f32 %v840, %v852
    %s854 = scalar_lea.vmem %s4, 29
    %v855 = vld [vmem:[%s854] sm:$0x1]
    %v857 = vlaneseq
    %v858 = vshrl.u32 %v857, 7
    %v859 = vsub.s32 0, %v858
    %v860 = vrot.slane %v855, %v859
    %v862 = vmul.f32 %v860, %v852
    %v863 = vadd.f32 %v850, %v862
    %v864 = vsub.f32 %v789, 36.0
    %v865 = vmax.f32 %v864, 0.0
    %v866 = vadd.f32 %v853, %v865
    %s867 = scalar_lea.vmem %s4, 30
    %v868 = vld [vmem:[%s867] sm:$0x1]
    %v870 = vlaneseq
    %v871 = vshrl.u32 %v870, 7
    %v872 = vsub.s32 0, %v871
    %v873 = vrot.slane %v868, %v872
    %v875 = vmul.f32 %v873, %v865
    %v876 = vadd.f32 %v863, %v875
    %v877 = vsub.f32 %v789, 49.0
    %v878 = vmax.f32 %v877, 0.0
    %v879 = vadd.f32 %v866, %v878
    %s880 = scalar_lea.vmem %s4, 31
    %v881 = vld [vmem:[%s880] sm:$0x1]
    %v883 = vlaneseq
    %v884 = vshrl.u32 %v883, 7
    %v885 = vsub.s32 0, %v884
    %v886 = vrot.slane %v881, %v885
    %v888 = vmul.f32 %v886, %v878
    %v889 = vadd.f32 %v876, %v888
    %v890 = vrcp.pop %v879
    %v891 = vmul.f32 %v889, %v890
    %892 = vset.pattern.permute.xlu0 3
    %893 = vperm.xlu0 %892, %v112
    %v894 = vpop.permute.xlu0 %893
    %v896 = vmul.f32 %v894, %v891
    %v897 = vadd.f32 %v787, %v896
    %v898 = vmul.f32 %v452, 8.0
    %v899 = vmul.f32 %v898, %v898
    %s900 = scalar_lea.vmem %s4, 32
    %v901 = vld [vmem:[%s900] sm:$0x1]
    %v903 = vlaneseq
    %v904 = vshrl.u32 %v903, 7
    %v905 = vsub.s32 0, %v904
    %v906 = vrot.slane %v901, %v905
    %v908 = vmul.f32 %v906, %v899
    %v909 = vsub.f32 %v899, 1.0
    %v910 = vmax.f32 %v909, 0.0
    %v911 = vadd.f32 %v899, %v910
    %s912 = scalar_lea.vmem %s4, 33
    %v913 = vld [vmem:[%s912] sm:$0x1]
    %v915 = vlaneseq
    %v916 = vshrl.u32 %v915, 7
    %v917 = vsub.s32 0, %v916
    %v918 = vrot.slane %v913, %v917
    %v920 = vmul.f32 %v918, %v910
    %v921 = vadd.f32 %v908, %v920
    %v922 = vsub.f32 %v899, 4.0
    %v923 = vmax.f32 %v922, 0.0
    %v924 = vadd.f32 %v911, %v923
    %s925 = scalar_lea.vmem %s4, 34
    %v926 = vld [vmem:[%s925] sm:$0x1]
    %v928 = vlaneseq
    %v929 = vshrl.u32 %v928, 7
    %v930 = vsub.s32 0, %v929
    %v931 = vrot.slane %v926, %v930
    %v933 = vmul.f32 %v931, %v923
    %v934 = vadd.f32 %v921, %v933
    %v935 = vsub.f32 %v899, 9.0
    %v936 = vmax.f32 %v935, 0.0
    %v937 = vadd.f32 %v924, %v936
    %s938 = scalar_lea.vmem %s4, 35
    %v939 = vld [vmem:[%s938] sm:$0x1]
    %v941 = vlaneseq
    %v942 = vshrl.u32 %v941, 7
    %v943 = vsub.s32 0, %v942
    %v944 = vrot.slane %v939, %v943
    %v946 = vmul.f32 %v944, %v936
    %v947 = vadd.f32 %v934, %v946
    %v948 = vsub.f32 %v899, 16.0
    %v949 = vmax.f32 %v948, 0.0
    %v950 = vadd.f32 %v937, %v949
    %s951 = scalar_lea.vmem %s4, 36
    %v952 = vld [vmem:[%s951] sm:$0x1]
    %v954 = vlaneseq
    %v955 = vshrl.u32 %v954, 7
    %v956 = vsub.s32 0, %v955
    %v957 = vrot.slane %v952, %v956
    %v959 = vmul.f32 %v957, %v949
    %v960 = vadd.f32 %v947, %v959
    %v961 = vsub.f32 %v899, 25.0
    %v962 = vmax.f32 %v961, 0.0
    %v963 = vadd.f32 %v950, %v962
    %s964 = scalar_lea.vmem %s4, 37
    %v965 = vld [vmem:[%s964] sm:$0x1]
    %v967 = vlaneseq
    %v968 = vshrl.u32 %v967, 7
    %v969 = vsub.s32 0, %v968
    %v970 = vrot.slane %v965, %v969
    %v972 = vmul.f32 %v970, %v962
    %v973 = vadd.f32 %v960, %v972
    %v974 = vsub.f32 %v899, 36.0
    %v975 = vmax.f32 %v974, 0.0
    %v976 = vadd.f32 %v963, %v975
    %s977 = scalar_lea.vmem %s4, 38
    %v978 = vld [vmem:[%s977] sm:$0x1]
    %v980 = vlaneseq
    %v981 = vshrl.u32 %v980, 7
    %v982 = vsub.s32 0, %v981
    %v983 = vrot.slane %v978, %v982
    %v985 = vmul.f32 %v983, %v975
    %v986 = vadd.f32 %v973, %v985
    %v987 = vsub.f32 %v899, 49.0
    %v988 = vmax.f32 %v987, 0.0
    %v989 = vadd.f32 %v976, %v988
    %s990 = scalar_lea.vmem %s4, 39
    %v991 = vld [vmem:[%s990] sm:$0x1]
    %v993 = vlaneseq
    %v994 = vshrl.u32 %v993, 7
    %v995 = vsub.s32 0, %v994
    %v996 = vrot.slane %v991, %v995
    %v998 = vmul.f32 %v996, %v988
    %v999 = vadd.f32 %v986, %v998
    %v1000 = vrcp.pop %v989
    %v1001 = vmul.f32 %v999, %v1000
    %1002 = vset.pattern.permute.xlu0 4
    %1003 = vperm.xlu0 %1002, %v112
    %v1004 = vpop.permute.xlu0 %1003
    %v1006 = vmul.f32 %v1004, %v1001
    %v1007 = vadd.f32 %v897, %v1006
    %v1008 = vmul.f32 %v454, 8.0
    %v1009 = vmul.f32 %v1008, %v1008
    %s1010 = scalar_lea.vmem %s4, 40
    %v1011 = vld [vmem:[%s1010] sm:$0x1]
    %v1013 = vlaneseq
    %v1014 = vshrl.u32 %v1013, 7
    %v1015 = vsub.s32 0, %v1014
    %v1016 = vrot.slane %v1011, %v1015
    %v1018 = vmul.f32 %v1016, %v1009
    %v1019 = vsub.f32 %v1009, 1.0
    %v1020 = vmax.f32 %v1019, 0.0
    %v1021 = vadd.f32 %v1009, %v1020
    %s1022 = scalar_lea.vmem %s4, 41
    %v1023 = vld [vmem:[%s1022] sm:$0x1]
    %v1025 = vlaneseq
    %v1026 = vshrl.u32 %v1025, 7
    %v1027 = vsub.s32 0, %v1026
    %v1028 = vrot.slane %v1023, %v1027
    %v1030 = vmul.f32 %v1028, %v1020
    %v1031 = vadd.f32 %v1018, %v1030
    %v1032 = vsub.f32 %v1009, 4.0
    %v1033 = vmax.f32 %v1032, 0.0
    %v1034 = vadd.f32 %v1021, %v1033
    %s1035 = scalar_lea.vmem %s4, 42
    %v1036 = vld [vmem:[%s1035] sm:$0x1]
    %v1038 = vlaneseq
    %v1039 = vshrl.u32 %v1038, 7
    %v1040 = vsub.s32 0, %v1039
    %v1041 = vrot.slane %v1036, %v1040
    %v1043 = vmul.f32 %v1041, %v1033
    %v1044 = vadd.f32 %v1031, %v1043
    %v1045 = vsub.f32 %v1009, 9.0
    %v1046 = vmax.f32 %v1045, 0.0
    %v1047 = vadd.f32 %v1034, %v1046
    %s1048 = scalar_lea.vmem %s4, 43
    %v1049 = vld [vmem:[%s1048] sm:$0x1]
    %v1051 = vlaneseq
    %v1052 = vshrl.u32 %v1051, 7
    %v1053 = vsub.s32 0, %v1052
    %v1054 = vrot.slane %v1049, %v1053
    %v1056 = vmul.f32 %v1054, %v1046
    %v1057 = vadd.f32 %v1044, %v1056
    %v1058 = vsub.f32 %v1009, 16.0
    %v1059 = vmax.f32 %v1058, 0.0
    %v1060 = vadd.f32 %v1047, %v1059
    %s1061 = scalar_lea.vmem %s4, 44
    %v1062 = vld [vmem:[%s1061] sm:$0x1]
    %v1064 = vlaneseq
    %v1065 = vshrl.u32 %v1064, 7
    %v1066 = vsub.s32 0, %v1065
    %v1067 = vrot.slane %v1062, %v1066
    %v1069 = vmul.f32 %v1067, %v1059
    %v1070 = vadd.f32 %v1057, %v1069
    %v1071 = vsub.f32 %v1009, 25.0
    %v1072 = vmax.f32 %v1071, 0.0
    %v1073 = vadd.f32 %v1060, %v1072
    %s1074 = scalar_lea.vmem %s4, 45
    %v1075 = vld [vmem:[%s1074] sm:$0x1]
    %v1077 = vlaneseq
    %v1078 = vshrl.u32 %v1077, 7
    %v1079 = vsub.s32 0, %v1078
    %v1080 = vrot.slane %v1075, %v1079
    %v1082 = vmul.f32 %v1080, %v1072
    %v1083 = vadd.f32 %v1070, %v1082
    %v1084 = vsub.f32 %v1009, 36.0
    %v1085 = vmax.f32 %v1084, 0.0
    %v1086 = vadd.f32 %v1073, %v1085
    %s1087 = scalar_lea.vmem %s4, 46
    %v1088 = vld [vmem:[%s1087] sm:$0x1]
    %v1090 = vlaneseq
    %v1091 = vshrl.u32 %v1090, 7
    %v1092 = vsub.s32 0, %v1091
    %v1093 = vrot.slane %v1088, %v1092
    %v1095 = vmul.f32 %v1093, %v1085
    %v1096 = vadd.f32 %v1083, %v1095
    %v1097 = vsub.f32 %v1009, 49.0
    %v1098 = vmax.f32 %v1097, 0.0
    %v1099 = vadd.f32 %v1086, %v1098
    %s1100 = scalar_lea.vmem %s4, 47
    %v1101 = vld [vmem:[%s1100] sm:$0x1]
    %v1103 = vlaneseq
    %v1104 = vshrl.u32 %v1103, 7
    %v1105 = vsub.s32 0, %v1104
    %v1106 = vrot.slane %v1101, %v1105
    %v1108 = vmul.f32 %v1106, %v1098
    %v1109 = vadd.f32 %v1096, %v1108
    %v1110 = vrcp.pop %v1099
    %v1111 = vmul.f32 %v1109, %v1110
    %1112 = vset.pattern.permute.xlu0 5
    %1113 = vperm.xlu0 %1112, %v112
    %v1114 = vpop.permute.xlu0 %1113
    %v1116 = vmul.f32 %v1114, %v1111
    %v1117 = vadd.f32 %v1007, %v1116
    %v1118 = vmul.f32 %v456, 8.0
    %v1119 = vmul.f32 %v1118, %v1118
    %s1120 = scalar_lea.vmem %s4, 48
    %v1121 = vld [vmem:[%s1120] sm:$0x1]
    %v1123 = vlaneseq
    %v1124 = vshrl.u32 %v1123, 7
    %v1125 = vsub.s32 0, %v1124
    %v1126 = vrot.slane %v1121, %v1125
    %v1128 = vmul.f32 %v1126, %v1119
    %v1129 = vsub.f32 %v1119, 1.0
    %v1130 = vmax.f32 %v1129, 0.0
    %v1131 = vadd.f32 %v1119, %v1130
    %s1132 = scalar_lea.vmem %s4, 49
    %v1133 = vld [vmem:[%s1132] sm:$0x1]
    %v1135 = vlaneseq
    %v1136 = vshrl.u32 %v1135, 7
    %v1137 = vsub.s32 0, %v1136
    %v1138 = vrot.slane %v1133, %v1137
    %v1140 = vmul.f32 %v1138, %v1130
    %v1141 = vadd.f32 %v1128, %v1140
    %v1142 = vsub.f32 %v1119, 4.0
    %v1143 = vmax.f32 %v1142, 0.0
    %v1144 = vadd.f32 %v1131, %v1143
    %s1145 = scalar_lea.vmem %s4, 50
    %v1146 = vld [vmem:[%s1145] sm:$0x1]
    %v1148 = vlaneseq
    %v1149 = vshrl.u32 %v1148, 7
    %v1150 = vsub.s32 0, %v1149
    %v1151 = vrot.slane %v1146, %v1150
    %v1153 = vmul.f32 %v1151, %v1143
    %v1154 = vadd.f32 %v1141, %v1153
    %v1155 = vsub.f32 %v1119, 9.0
    %v1156 = vmax.f32 %v1155, 0.0
    %v1157 = vadd.f32 %v1144, %v1156
    %s1158 = scalar_lea.vmem %s4, 51
    %v1159 = vld [vmem:[%s1158] sm:$0x1]
    %v1161 = vlaneseq
    %v1162 = vshrl.u32 %v1161, 7
    %v1163 = vsub.s32 0, %v1162
    %v1164 = vrot.slane %v1159, %v1163
    %v1166 = vmul.f32 %v1164, %v1156
    %v1167 = vadd.f32 %v1154, %v1166
    %v1168 = vsub.f32 %v1119, 16.0
    %v1169 = vmax.f32 %v1168, 0.0
    %v1170 = vadd.f32 %v1157, %v1169
    %s1171 = scalar_lea.vmem %s4, 52
    %v1172 = vld [vmem:[%s1171] sm:$0x1]
    %v1174 = vlaneseq
    %v1175 = vshrl.u32 %v1174, 7
    %v1176 = vsub.s32 0, %v1175
    %v1177 = vrot.slane %v1172, %v1176
    %v1179 = vmul.f32 %v1177, %v1169
    %v1180 = vadd.f32 %v1167, %v1179
    %v1181 = vsub.f32 %v1119, 25.0
    %v1182 = vmax.f32 %v1181, 0.0
    %v1183 = vadd.f32 %v1170, %v1182
    %s1184 = scalar_lea.vmem %s4, 53
    %v1185 = vld [vmem:[%s1184] sm:$0x1]
    %v1187 = vlaneseq
    %v1188 = vshrl.u32 %v1187, 7
    %v1189 = vsub.s32 0, %v1188
    %v1190 = vrot.slane %v1185, %v1189
    %v1192 = vmul.f32 %v1190, %v1182
    %v1193 = vadd.f32 %v1180, %v1192
    %v1194 = vsub.f32 %v1119, 36.0
    %v1195 = vmax.f32 %v1194, 0.0
    %v1196 = vadd.f32 %v1183, %v1195
    %s1197 = scalar_lea.vmem %s4, 54
    %v1198 = vld [vmem:[%s1197] sm:$0x1]
    %v1200 = vlaneseq
    %v1201 = vshrl.u32 %v1200, 7
    %v1202 = vsub.s32 0, %v1201
    %v1203 = vrot.slane %v1198, %v1202
    %v1205 = vmul.f32 %v1203, %v1195
    %v1206 = vadd.f32 %v1193, %v1205
    %v1207 = vsub.f32 %v1119, 49.0
    %v1208 = vmax.f32 %v1207, 0.0
    %v1209 = vadd.f32 %v1196, %v1208
    %s1210 = scalar_lea.vmem %s4, 55
    %v1211 = vld [vmem:[%s1210] sm:$0x1]
    %v1213 = vlaneseq
    %v1214 = vshrl.u32 %v1213, 7
    %v1215 = vsub.s32 0, %v1214
    %v1216 = vrot.slane %v1211, %v1215
    %v1218 = vmul.f32 %v1216, %v1208
    %v1219 = vadd.f32 %v1206, %v1218
    %v1220 = vrcp.pop %v1209
    %v1221 = vmul.f32 %v1219, %v1220
    %1222 = vset.pattern.permute.xlu0 6
    %1223 = vperm.xlu0 %1222, %v112
    %v1224 = vpop.permute.xlu0 %1223
    %v1226 = vmul.f32 %v1224, %v1221
    %v1227 = vadd.f32 %v1117, %v1226
    %v1228 = vmul.f32 %v458, 8.0
    %v1229 = vmul.f32 %v1228, %v1228
    %s1230 = scalar_lea.vmem %s4, 56
    %v1231 = vld [vmem:[%s1230] sm:$0x1]
    %v1233 = vlaneseq
    %v1234 = vshrl.u32 %v1233, 7
    %v1235 = vsub.s32 0, %v1234
    %v1236 = vrot.slane %v1231, %v1235
    %v1238 = vmul.f32 %v1236, %v1229
    %v1239 = vsub.f32 %v1229, 1.0
    %v1240 = vmax.f32 %v1239, 0.0
    %v1241 = vadd.f32 %v1229, %v1240
    %s1242 = scalar_lea.vmem %s4, 57
    %v1243 = vld [vmem:[%s1242] sm:$0x1]
    %v1245 = vlaneseq
    %v1246 = vshrl.u32 %v1245, 7
    %v1247 = vsub.s32 0, %v1246
    %v1248 = vrot.slane %v1243, %v1247
    %v1250 = vmul.f32 %v1248, %v1240
    %v1251 = vadd.f32 %v1238, %v1250
    %v1252 = vsub.f32 %v1229, 4.0
    %v1253 = vmax.f32 %v1252, 0.0
    %v1254 = vadd.f32 %v1241, %v1253
    %s1255 = scalar_lea.vmem %s4, 58
    %v1256 = vld [vmem:[%s1255] sm:$0x1]
    %v1258 = vlaneseq
    %v1259 = vshrl.u32 %v1258, 7
    %v1260 = vsub.s32 0, %v1259
    %v1261 = vrot.slane %v1256, %v1260
    %v1263 = vmul.f32 %v1261, %v1253
    %v1264 = vadd.f32 %v1251, %v1263
    %v1265 = vsub.f32 %v1229, 9.0
    %v1266 = vmax.f32 %v1265, 0.0
    %v1267 = vadd.f32 %v1254, %v1266
    %s1268 = scalar_lea.vmem %s4, 59
    %v1269 = vld [vmem:[%s1268] sm:$0x1]
    %v1271 = vlaneseq
    %v1272 = vshrl.u32 %v1271, 7
    %v1273 = vsub.s32 0, %v1272
    %v1274 = vrot.slane %v1269, %v1273
    %v1276 = vmul.f32 %v1274, %v1266
    %v1277 = vadd.f32 %v1264, %v1276
    %v1278 = vsub.f32 %v1229, 16.0
    %v1279 = vmax.f32 %v1278, 0.0
    %v1280 = vadd.f32 %v1267, %v1279
    %s1281 = scalar_lea.vmem %s4, 60
    %v1282 = vld [vmem:[%s1281] sm:$0x1]
    %v1284 = vlaneseq
    %v1285 = vshrl.u32 %v1284, 7
    %v1286 = vsub.s32 0, %v1285
    %v1287 = vrot.slane %v1282, %v1286
    %v1289 = vmul.f32 %v1287, %v1279
    %v1290 = vadd.f32 %v1277, %v1289
    %v1291 = vsub.f32 %v1229, 25.0
    %v1292 = vmax.f32 %v1291, 0.0
    %v1293 = vadd.f32 %v1280, %v1292
    %s1294 = scalar_lea.vmem %s4, 61
    %v1295 = vld [vmem:[%s1294] sm:$0x1]
    %v1297 = vlaneseq
    %v1298 = vshrl.u32 %v1297, 7
    %v1299 = vsub.s32 0, %v1298
    %v1300 = vrot.slane %v1295, %v1299
    %v1302 = vmul.f32 %v1300, %v1292
    %v1303 = vadd.f32 %v1290, %v1302
    %v1304 = vsub.f32 %v1229, 36.0
    %v1305 = vmax.f32 %v1304, 0.0
    %v1306 = vadd.f32 %v1293, %v1305
    %s1307 = scalar_lea.vmem %s4, 62
    %v1308 = vld [vmem:[%s1307] sm:$0x1]
    %v1310 = vlaneseq
    %v1311 = vshrl.u32 %v1310, 7
    %v1312 = vsub.s32 0, %v1311
    %v1313 = vrot.slane %v1308, %v1312
    %v1315 = vmul.f32 %v1313, %v1305
    %v1316 = vadd.f32 %v1303, %v1315
    %v1317 = vsub.f32 %v1229, 49.0
    %v1318 = vmax.f32 %v1317, 0.0
    %v1319 = vadd.f32 %v1306, %v1318
    %s1320 = scalar_lea.vmem %s4, 63
    %v1321 = vld [vmem:[%s1320] sm:$0x1]
    %v1323 = vlaneseq
    %v1324 = vshrl.u32 %v1323, 7
    %v1325 = vsub.s32 0, %v1324
    %v1326 = vrot.slane %v1321, %v1325
    %v1328 = vmul.f32 %v1326, %v1318
    %v1329 = vadd.f32 %v1316, %v1328
    %v1330 = vrcp.pop %v1319
    %v1331 = vmul.f32 %v1329, %v1330
    %1332 = vset.pattern.permute.xlu0 7
    %1333 = vperm.xlu0 %1332, %v112
    %v1334 = vpop.permute.xlu0 %1333
    %v1336 = vmul.f32 %v1334, %v1331
    %v1337 = vadd.f32 %v1227, %v1336
    %1338 = vst [vmem:[#allocation2] sm:$0x3] %v1337
    // Predicated region
    $region22: #{tpu_custom_call.1} parent=1 // pred_check
      _
    $region23: #{tpu_custom_call.1} parent=1 // pred_check_branch
      %1340 = sbr.rel (0) target = $region25
    $region24: #{tpu_custom_call.1} parent=1 // pred_region
      %s1342 = ssub.s32 32, 32
      %1343 = vsyncadd [#allocation3], %s1342
      %s1345 = sshll.u32 [#allocation2], 4
      %s1346 = int_to_ptr.vmem [resolvable:$true] %s1345
      %1348 = dma.vmem_to_hbm [thread:$0]  %s1346, 32, %s5, [#allocation3]
    $region25: #{tpu_custom_call.1} parent=1 // pred_fallthru
      _
    // Predicated region
    $region26: #{tpu_custom_call.1} parent=1 // pred_check
      _
    $region27: #{tpu_custom_call.1} parent=1 // pred_check_branch
      %1350 = sbr.rel (0) target = $region29
    $region28: #{tpu_custom_call.1} parent=1 // pred_region
      %1351 = dma.done [#allocation3], 32
    $region29: #{tpu_custom_call.1} parent=1 // pred_fallthru
      _
    %1352 = vsyncpa [#allocation3], 1

</llo_original>
